<compile_context>
chip_gen: v7x
topology: tpu7x:2x2x1
jax: 0.10.0
libtpu: 0.0.40
codegen_flags: <defaults>
</compile_context>

<pallas_src>
import jax
import jax.numpy as jnp
from jax.experimental import pallas as pl
from jax.experimental.pallas import tpu as pltpu


def _make_spatial_attention_kernel(b_tile, c, h, w):
    hw = h * w
    pad = 3 * w + 3  # flat offset covering any (+/-3 row, +/-3 col) shift

    def kernel(x_ref, w_ref, colj_ref, o_ref, avg_line, max_line):
        """Fused SpatialAttention for a block of B_TILE batch elements.

        x_ref    : (B_TILE, C, H*W) VMEM input block (caller dtype)
        w_ref    : (98,) f32 SMEM - conv weight (1, 2, 7, 7) flattened
                   (index = ci*49 + kh*7 + kw; ci: 0=avg, 1=max)
        colj_ref : (1, H*W) int32 VMEM, colj[p] = p % W
        o_ref    : (B_TILE, C, H*W) VMEM output block (caller dtype)
        avg_line : (1, H*W + 2*pad) f32 VMEM scratch (zero-haloed mean line)
        max_line : (1, H*W + 2*pad) f32 VMEM scratch (zero-haloed max line)
        """
        # Zero only the halo ends of the padded lines, once per grid step
        # (the interior is overwritten for every batch element below).
        halo = jnp.zeros((1, pad), jnp.float32)
        avg_line[:, 0:pad] = halo
        avg_line[:, pad + hw:] = halo
        max_line[:, 0:pad] = halo
        max_line[:, pad + hw:] = halo

        # Column-validity masks for the 7 horizontal taps (hoisted: one select
        # per kw instead of per tap; shared by both maps and all batches).
        cj = colj_ref[...]                                   # (1, HW) int32
        col_ok = [(cj >= max(0, -dw)) & (cj < min(w, w - dw))
                  for dw in range(-3, 4)]

        for bi in range(b_tile):                             # static, small
            # Channel mean / max in the lane-dense flat layout.
            xb = x_ref[bi].astype(jnp.float32)               # (C, HW)
            avg_line[:, pad:pad + hw] = jnp.mean(xb, axis=0, keepdims=True)
            max_line[:, pad:pad + hw] = jnp.max(xb, axis=0, keepdims=True)

            # 7x7 conv (2 in-ch -> 1 out-ch, padding 3, no bias) as 98
            # scalar-weighted lane-offset windows of the padded lines: pure
            # lane-dense VPU MACs.  Row over/underflow reads the zero halo;
            # column row-crossings are cancelled by the per-kw masks.
            acc = jnp.zeros((1, hw), jnp.float32)
            for dw in range(-3, 4):
                kw = dw + 3
                band = jnp.zeros((1, hw), jnp.float32)
                for dh in range(-3, 4):
                    kh = dh + 3
                    off = pad + dh * w + dw
                    band = band + w_ref[kh * 7 + kw] * avg_line[:, off:off + hw]
                    band = band + w_ref[49 + kh * 7 + kw] * max_line[:, off:off + hw]
                acc = acc + (band if dw == 0
                             else jnp.where(col_ok[kw], band, 0.0))

            att = jax.nn.sigmoid(acc)                        # (1, HW), EUP
            # Re-read x (short live range across the unrolled conv) and store
            # the lane-dense product in the caller's dtype.
            o_ref[bi] = (x_ref[bi].astype(jnp.float32) * att).astype(o_ref.dtype)

    return kernel


@jax.jit
def spatial_attention_forward(x_nchw, conv_w):
    """x_nchw: (N, C, H, W); conv_w: (1, 2, 7, 7) OIHW (avg channel first).

    Returns (N, C, H, W) in x_nchw.dtype (matches the PyTorch module)."""
    n, c, h, w = x_nchw.shape
    hw = h * w
    pad = 3 * w + 3

    # Block several batch elements per grid step, but keep >= 2 grid steps
    # when possible so megacore "parallel" sharding has work for both cores.
    b_tile = 1
    for cand in (8, 4, 2):
        if n % cand == 0 and n // cand >= 2:
            b_tile = cand
            break

    x_flat = x_nchw.reshape(n, c, hw)                    # free: contiguous
    w_flat = conv_w.reshape(-1).astype(jnp.float32)      # (98,) SMEM scalars
    col_j = jnp.tile(jnp.arange(w, dtype=jnp.int32), h)[None, :]   # (1, HW)

    itemsize = jnp.dtype(x_nchw.dtype).itemsize
    block_bytes = b_tile * c * hw * itemsize
    scratch_bytes = 2 * (hw + 2 * pad) * 4
    vmem_limit = int(min(max(4 * block_bytes + scratch_bytes + (2 << 20),
                             32 << 20), 48 << 20))

    out_flat = pl.pallas_call(
        _make_spatial_attention_kernel(b_tile, c, h, w),
        out_shape=jax.ShapeDtypeStruct((n, c, hw), x_nchw.dtype),
        grid=(n // b_tile,),
        in_specs=[
            pl.BlockSpec((b_tile, c, hw), lambda i: (i, 0, 0)),
            pl.BlockSpec(memory_space=pltpu.MemorySpace.SMEM),
            pl.BlockSpec((1, hw), lambda i: (0, 0)),
        ],
        out_specs=pl.BlockSpec((b_tile, c, hw), lambda i: (i, 0, 0)),
        scratch_shapes=[
            pltpu.VMEM((1, hw + 2 * pad), jnp.float32),
            pltpu.VMEM((1, hw + 2 * pad), jnp.float32),
        ],
        compiler_params=pltpu.CompilerParams(
            dimension_semantics=("parallel",),
            vmem_limit_bytes=vmem_limit),
    )(x_flat, w_flat, col_j)
    return out_flat.reshape(n, c, h, w)


# ---------------------------------------------------------------------------
# Pure-JAX reference (same semantics as the PyTorch module) for verification.
# ---------------------------------------------------------------------------
def reference_forward(x, conv_w):
    avg = jnp.mean(x, axis=1, keepdims=True)
    mx = jnp.max(x, axis=1, keepdims=True)
    s = jnp.concatenate([avg, mx], axis=1)
    s = jax.lax.conv_general_dilated(
        s, conv_w, (1, 1), ((3, 3), (3, 3)),
        dimension_numbers=("NCHW", "OIHW", "NCHW"))
    return x * jax.nn.sigmoid(s)


if __name__ == "__main__":
    key = jax.random.PRNGKey(0)
    k_x, k_w = jax.random.split(key)

    N, C, H, W = 2, 4, 16, 16
    x = jax.random.normal(k_x, (N, C, H, W), jnp.float32)
    conv_w = 0.1 * jax.random.normal(k_w, (1, 2, 7, 7), jnp.float32)

    # f32 path
    out = jax.block_until_ready(spatial_attention_forward(x, conv_w))
    ref = jax.block_until_ready(reference_forward(x, conv_w))
    assert out.shape == (N, C, H, W) and out.dtype == x.dtype
    max_err = float(jnp.max(jnp.abs(out - ref)))
    assert jnp.allclose(out, ref, atol=2e-3, rtol=2e-3), max_err

    # dtype-preserving path (bf16 in / bf16 out, f32 internal math)
    x_bf16 = x.astype(jnp.bfloat16)
    out_bf16 = jax.block_until_ready(spatial_attention_forward(x_bf16, conv_w))
    ref_bf16 = reference_forward(x_bf16.astype(jnp.float32), conv_w)
    assert out_bf16.dtype == jnp.bfloat16
    assert jnp.allclose(out_bf16.astype(jnp.float32), ref_bf16,
                        atol=1e-1, rtol=1e-1)

    print("KERNEL_OK")
</pallas_src>

<mosaic_0001>
module attributes {stable_mosaic.version = 11 : i64} {
  func.func @kernel(%arg0: i32, %arg1: memref<1x4x256xf32, #tpu.memory_space<vmem>>, %arg2: memref<98xf32, #tpu.memory_space<smem>>, %arg3: memref<1x256xi32, #tpu.memory_space<vmem>>, %arg4: memref<1x4x256xf32, #tpu.memory_space<vmem>>, %arg5: memref<1x358xf32, #tpu.memory_space<vmem>>, %arg6: memref<1x358xf32, #tpu.memory_space<vmem>>) attributes {dimension_semantics = [#tpu.dimension_semantics<parallel>], iteration_bounds = array<i64: 2>, scalar_prefetch = 0 : i64, scratch_operands = 2 : i64, tpu.core_type = #tpu.core_type<tc>, window_params = [{transform_indices = @transform_0, window_bounds = array<i64: 1, 4, 256>}, {transform_indices = @transform_1, window_bounds = array<i64: 98>}, {pipeline_mode = #tpu.pipeline_mode<synchronous>, transform_indices = @transform_2, window_bounds = array<i64: 1, 256>}, {transform_indices = @transform_3, window_bounds = array<i64: 1, 4, 256>}]} {
    %cst = arith.constant 0.000000e+00 : f32
    %0 = vector.broadcast %cst : f32 to vector<1x51xf32>
    %c0 = arith.constant 0 : index
    %c0_0 = arith.constant 0 : index
    %1 = vector.load %arg5[%c0, %c0_0] : memref<1x358xf32, #tpu.memory_space<vmem>>, vector<1x51xf32>
    tpu.vector_store %arg5[%c0, %c0_0], %0 {strides = array<i32>} : memref<1x358xf32, #tpu.memory_space<vmem>>, vector<1x51xf32>,
    %c0_1 = arith.constant 0 : index
    %c307 = arith.constant 307 : index
    %2 = vector.load %arg5[%c0_1, %c307] : memref<1x358xf32, #tpu.memory_space<vmem>>, vector<1x51xf32>
    tpu.vector_store %arg5[%c0_1, %c307], %0 {strides = array<i32>} : memref<1x358xf32, #tpu.memory_space<vmem>>, vector<1x51xf32>,
    %c0_2 = arith.constant 0 : index
    %c0_3 = arith.constant 0 : index
    %3 = vector.load %arg6[%c0_2, %c0_3] : memref<1x358xf32, #tpu.memory_space<vmem>>, vector<1x51xf32>
    tpu.vector_store %arg6[%c0_2, %c0_3], %0 {strides = array<i32>} : memref<1x358xf32, #tpu.memory_space<vmem>>, vector<1x51xf32>,
    %c0_4 = arith.constant 0 : index
    %c307_5 = arith.constant 307 : index
    %4 = vector.load %arg6[%c0_4, %c307_5] : memref<1x358xf32, #tpu.memory_space<vmem>>, vector<1x51xf32>
    tpu.vector_store %arg6[%c0_4, %c307_5], %0 {strides = array<i32>} : memref<1x358xf32, #tpu.memory_space<vmem>>, vector<1x51xf32>,
    %c0_6 = arith.constant 0 : index
    %c0_7 = arith.constant 0 : index
    %5 = vector.load %arg3[%c0_6, %c0_7] : memref<1x256xi32, #tpu.memory_space<vmem>>, vector<1x256xi32>
    %c3_i32 = arith.constant 3 : i32
    %6 = vector.broadcast %c3_i32 : i32 to vector<1x256xi32>
    %7 = arith.cmpi sge, %5, %6 : vector<1x256xi32>
    %c16_i32 = arith.constant 16 : i32
    %8 = vector.broadcast %c16_i32 : i32 to vector<1x256xi32>
    %9 = arith.cmpi slt, %5, %8 : vector<1x256xi32>
    %10 = arith.andi %7, %9 : vector<1x256xi1>
    %c2_i32 = arith.constant 2 : i32
    %11 = vector.broadcast %c2_i32 : i32 to vector<1x256xi32>
    %12 = arith.cmpi sge, %5, %11 : vector<1x256xi32>
    %c16_i32_8 = arith.constant 16 : i32
    %13 = vector.broadcast %c16_i32_8 : i32 to vector<1x256xi32>
    %14 = arith.cmpi slt, %5, %13 : vector<1x256xi32>
    %15 = arith.andi %12, %14 : vector<1x256xi1>
    %c1_i32 = arith.constant 1 : i32
    %16 = vector.broadcast %c1_i32 : i32 to vector<1x256xi32>
    %17 = arith.cmpi sge, %5, %16 : vector<1x256xi32>
    %c16_i32_9 = arith.constant 16 : i32
    %18 = vector.broadcast %c16_i32_9 : i32 to vector<1x256xi32>
    %19 = arith.cmpi slt, %5, %18 : vector<1x256xi32>
    %20 = arith.andi %17, %19 : vector<1x256xi1>
    %c0_i32 = arith.constant 0 : i32
    %21 = vector.broadcast %c0_i32 : i32 to vector<1x256xi32>
    %22 = arith.cmpi sge, %5, %21 : vector<1x256xi32>
    %c15_i32 = arith.constant 15 : i32
    %23 = vector.broadcast %c15_i32 : i32 to vector<1x256xi32>
    %24 = arith.cmpi slt, %5, %23 : vector<1x256xi32>
    %25 = arith.andi %22, %24 : vector<1x256xi1>
    %c0_i32_10 = arith.constant 0 : i32
    %26 = vector.broadcast %c0_i32_10 : i32 to vector<1x256xi32>
    %27 = arith.cmpi sge, %5, %26 : vector<1x256xi32>
    %c14_i32 = arith.constant 14 : i32
    %28 = vector.broadcast %c14_i32 : i32 to vector<1x256xi32>
    %29 = arith.cmpi slt, %5, %28 : vector<1x256xi32>
    %30 = arith.andi %27, %29 : vector<1x256xi1>
    %c0_i32_11 = arith.constant 0 : i32
    %31 = vector.broadcast %c0_i32_11 : i32 to vector<1x256xi32>
    %32 = arith.cmpi sge, %5, %31 : vector<1x256xi32>
    %c13_i32 = arith.constant 13 : i32
    %33 = vector.broadcast %c13_i32 : i32 to vector<1x256xi32>
    %34 = arith.cmpi slt, %5, %33 : vector<1x256xi32>
    %35 = arith.andi %32, %34 : vector<1x256xi1>
    %c0_12 = arith.constant 0 : index
    %c0_13 = arith.constant 0 : index
    %c0_14 = arith.constant 0 : index
    %36 = vector.load %arg1[%c0_12, %c0_13, %c0_14] : memref<1x4x256xf32, #tpu.memory_space<vmem>>, vector<1x4x256xf32>
    %37 = vector.shape_cast %36 : vector<1x4x256xf32> to vector<4x256xf32>
    %cst_15 = arith.constant dense<0.000000e+00> : vector<256xf32>
    %38 = vector.multi_reduction <add>, %37, %cst_15 [0] : vector<4x256xf32> to vector<256xf32>
    %39 = vector.shape_cast %38 : vector<256xf32> to vector<1x256xf32>
    %cst_16 = arith.constant 4.000000e+00 : f32
    %40 = vector.broadcast %cst_16 : f32 to vector<1x256xf32>
    %41 = arith.divf %39, %40 : vector<1x256xf32>
    %c0_17 = arith.constant 0 : index
    %c51 = arith.constant 51 : index
    %42 = vector.load %arg5[%c0_17, %c51] : memref<1x358xf32, #tpu.memory_space<vmem>>, vector<1x256xf32>
    tpu.vector_store %arg5[%c0_17, %c51], %41 {strides = array<i32>} : memref<1x358xf32, #tpu.memory_space<vmem>>, vector<1x256xf32>,
    %cst_18 = arith.constant dense<0xFF800000> : vector<256xf32>
    %43 = vector.multi_reduction <maximumf>, %37, %cst_18 [0] : vector<4x256xf32> to vector<256xf32>
    %44 = vector.shape_cast %43 : vector<256xf32> to vector<1x256xf32>
    %c0_19 = arith.constant 0 : index
    %c51_20 = arith.constant 51 : index
    %45 = vector.load %arg6[%c0_19, %c51_20] : memref<1x358xf32, #tpu.memory_space<vmem>>, vector<1x256xf32>
    tpu.vector_store %arg6[%c0_19, %c51_20], %44 {strides = array<i32>} : memref<1x358xf32, #tpu.memory_space<vmem>>, vector<1x256xf32>,
    %cst_21 = arith.constant 0.000000e+00 : f32
    %46 = vector.broadcast %cst_21 : f32 to vector<1x256xf32>
    %cst_22 = arith.constant 0.000000e+00 : f32
    %47 = vector.broadcast %cst_22 : f32 to vector<1x256xf32>
    %c0_23 = arith.constant 0 : index
    %48 = memref.load %arg2[%c0_23] : memref<98xf32, #tpu.memory_space<smem>>
    %c0_24 = arith.constant 0 : index
    %c0_25 = arith.constant 0 : index
    %49 = vector.load %arg5[%c0_24, %c0_25] : memref<1x358xf32, #tpu.memory_space<vmem>>, vector<1x256xf32>
    %50 = vector.broadcast %48 : f32 to vector<1x256xf32>
    %51 = arith.mulf %50, %49 : vector<1x256xf32>
    %52 = arith.addf %47, %51 : vector<1x256xf32>
    %c49 = arith.constant 49 : index
    %53 = memref.load %arg2[%c49] : memref<98xf32, #tpu.memory_space<smem>>
    %c0_26 = arith.constant 0 : index
    %c0_27 = arith.constant 0 : index
    %54 = vector.load %arg6[%c0_26, %c0_27] : memref<1x358xf32, #tpu.memory_space<vmem>>, vector<1x256xf32>
    %55 = vector.broadcast %53 : f32 to vector<1x256xf32>
    %56 = arith.mulf %55, %54 : vector<1x256xf32>
    %57 = arith.addf %52, %56 : vector<1x256xf32>
    %c7 = arith.constant 7 : index
    %58 = memref.load %arg2[%c7] : memref<98xf32, #tpu.memory_space<smem>>
    %c0_28 = arith.constant 0 : index
    %c16 = arith.constant 16 : index
    %59 = vector.load %arg5[%c0_28, %c16] : memref<1x358xf32, #tpu.memory_space<vmem>>, vector<1x256xf32>
    %60 = vector.broadcast %58 : f32 to vector<1x256xf32>
    %61 = arith.mulf %60, %59 : vector<1x256xf32>
    %62 = arith.addf %57, %61 : vector<1x256xf32>
    %c56 = arith.constant 56 : index
    %63 = memref.load %arg2[%c56] : memref<98xf32, #tpu.memory_space<smem>>
    %c0_29 = arith.constant 0 : index
    %c16_30 = arith.constant 16 : index
    %64 = vector.load %arg6[%c0_29, %c16_30] : memref<1x358xf32, #tpu.memory_space<vmem>>, vector<1x256xf32>
    %65 = vector.broadcast %63 : f32 to vector<1x256xf32>
    %66 = arith.mulf %65, %64 : vector<1x256xf32>
    %67 = arith.addf %62, %66 : vector<1x256xf32>
    %c14 = arith.constant 14 : index
    %68 = memref.load %arg2[%c14] : memref<98xf32, #tpu.memory_space<smem>>
    %c0_31 = arith.constant 0 : index
    %c32 = arith.constant 32 : index
    %69 = vector.load %arg5[%c0_31, %c32] : memref<1x358xf32, #tpu.memory_space<vmem>>, vector<1x256xf32>
    %70 = vector.broadcast %68 : f32 to vector<1x256xf32>
    %71 = arith.mulf %70, %69 : vector<1x256xf32>
    %72 = arith.addf %67, %71 : vector<1x256xf32>
    %c63 = arith.constant 63 : index
    %73 = memref.load %arg2[%c63] : memref<98xf32, #tpu.memory_space<smem>>
    %c0_32 = arith.constant 0 : index
    %c32_33 = arith.constant 32 : index
    %74 = vector.load %arg6[%c0_32, %c32_33] : memref<1x358xf32, #tpu.memory_space<vmem>>, vector<1x256xf32>
    %75 = vector.broadcast %73 : f32 to vector<1x256xf32>
    %76 = arith.mulf %75, %74 : vector<1x256xf32>
    %77 = arith.addf %72, %76 : vector<1x256xf32>
    %c21 = arith.constant 21 : index
    %78 = memref.load %arg2[%c21] : memref<98xf32, #tpu.memory_space<smem>>
    %c0_34 = arith.constant 0 : index
    %c48 = arith.constant 48 : index
    %79 = vector.load %arg5[%c0_34, %c48] : memref<1x358xf32, #tpu.memory_space<vmem>>, vector<1x256xf32>
    %80 = vector.broadcast %78 : f32 to vector<1x256xf32>
    %81 = arith.mulf %80, %79 : vector<1x256xf32>
    %82 = arith.addf %77, %81 : vector<1x256xf32>
    %c70 = arith.constant 70 : index
    %83 = memref.load %arg2[%c70] : memref<98xf32, #tpu.memory_space<smem>>
    %c0_35 = arith.constant 0 : index
    %c48_36 = arith.constant 48 : index
    %84 = vector.load %arg6[%c0_35, %c48_36] : memref<1x358xf32, #tpu.memory_space<vmem>>, vector<1x256xf32>
    %85 = vector.broadcast %83 : f32 to vector<1x256xf32>
    %86 = arith.mulf %85, %84 : vector<1x256xf32>
    %87 = arith.addf %82, %86 : vector<1x256xf32>
    %c28 = arith.constant 28 : index
    %88 = memref.load %arg2[%c28] : memref<98xf32, #tpu.memory_space<smem>>
    %c0_37 = arith.constant 0 : index
    %c64 = arith.constant 64 : index
    %89 = vector.load %arg5[%c0_37, %c64] : memref<1x358xf32, #tpu.memory_space<vmem>>, vector<1x256xf32>
    %90 = vector.broadcast %88 : f32 to vector<1x256xf32>
    %91 = arith.mulf %90, %89 : vector<1x256xf32>
    %92 = arith.addf %87, %91 : vector<1x256xf32>
    %c77 = arith.constant 77 : index
    %93 = memref.load %arg2[%c77] : memref<98xf32, #tpu.memory_space<smem>>
    %c0_38 = arith.constant 0 : index
    %c64_39 = arith.constant 64 : index
    %94 = vector.load %arg6[%c0_38, %c64_39] : memref<1x358xf32, #tpu.memory_space<vmem>>, vector<1x256xf32>
    %95 = vector.broadcast %93 : f32 to vector<1x256xf32>
    %96 = arith.mulf %95, %94 : vector<1x256xf32>
    %97 = arith.addf %92, %96 : vector<1x256xf32>
    %c35 = arith.constant 35 : index
    %98 = memref.load %arg2[%c35] : memref<98xf32, #tpu.memory_space<smem>>
    %c0_40 = arith.constant 0 : index
    %c80 = arith.constant 80 : index
    %99 = vector.load %arg5[%c0_40, %c80] : memref<1x358xf32, #tpu.memory_space<vmem>>, vector<1x256xf32>
    %100 = vector.broadcast %98 : f32 to vector<1x256xf32>
    %101 = arith.mulf %100, %99 : vector<1x256xf32>
    %102 = arith.addf %97, %101 : vector<1x256xf32>
    %c84 = arith.constant 84 : index
    %103 = memref.load %arg2[%c84] : memref<98xf32, #tpu.memory_space<smem>>
    %c0_41 = arith.constant 0 : index
    %c80_42 = arith.constant 80 : index
    %104 = vector.load %arg6[%c0_41, %c80_42] : memref<1x358xf32, #tpu.memory_space<vmem>>, vector<1x256xf32>
    %105 = vector.broadcast %103 : f32 to vector<1x256xf32>
    %106 = arith.mulf %105, %104 : vector<1x256xf32>
    %107 = arith.addf %102, %106 : vector<1x256xf32>
    %c42 = arith.constant 42 : index
    %108 = memref.load %arg2[%c42] : memref<98xf32, #tpu.memory_space<smem>>
    %c0_43 = arith.constant 0 : index
    %c96 = arith.constant 96 : index
    %109 = vector.load %arg5[%c0_43, %c96] : memref<1x358xf32, #tpu.memory_space<vmem>>, vector<1x256xf32>
    %110 = vector.broadcast %108 : f32 to vector<1x256xf32>
    %111 = arith.mulf %110, %109 : vector<1x256xf32>
    %112 = arith.addf %107, %111 : vector<1x256xf32>
    %c91 = arith.constant 91 : index
    %113 = memref.load %arg2[%c91] : memref<98xf32, #tpu.memory_space<smem>>
    %c0_44 = arith.constant 0 : index
    %c96_45 = arith.constant 96 : index
    %114 = vector.load %arg6[%c0_44, %c96_45] : memref<1x358xf32, #tpu.memory_space<vmem>>, vector<1x256xf32>
    %115 = vector.broadcast %113 : f32 to vector<1x256xf32>
    %116 = arith.mulf %115, %114 : vector<1x256xf32>
    %117 = arith.addf %112, %116 : vector<1x256xf32>
    %cst_46 = arith.constant 0.000000e+00 : f32
    %118 = vector.broadcast %cst_46 : f32 to vector<1x256xf32>
    %119 = arith.select %10, %117, %118 : vector<1x256xi1>, vector<1x256xf32>
    %120 = arith.addf %46, %119 : vector<1x256xf32>
    %cst_47 = arith.constant 0.000000e+00 : f32
    %121 = vector.broadcast %cst_47 : f32 to vector<1x256xf32>
    %c1 = arith.constant 1 : index
    %122 = memref.load %arg2[%c1] : memref<98xf32, #tpu.memory_space<smem>>
    %c0_48 = arith.constant 0 : index
    %c1_49 = arith.constant 1 : index
    %123 = vector.load %arg5[%c0_48, %c1_49] : memref<1x358xf32, #tpu.memory_space<vmem>>, vector<1x256xf32>
    %124 = vector.broadcast %122 : f32 to vector<1x256xf32>
    %125 = arith.mulf %124, %123 : vector<1x256xf32>
    %126 = arith.addf %121, %125 : vector<1x256xf32>
    %c50 = arith.constant 50 : index
    %127 = memref.load %arg2[%c50] : memref<98xf32, #tpu.memory_space<smem>>
    %c0_50 = arith.constant 0 : index
    %c1_51 = arith.constant 1 : index
    %128 = vector.load %arg6[%c0_50, %c1_51] : memref<1x358xf32, #tpu.memory_space<vmem>>, vector<1x256xf32>
    %129 = vector.broadcast %127 : f32 to vector<1x256xf32>
    %130 = arith.mulf %129, %128 : vector<1x256xf32>
    %131 = arith.addf %126, %130 : vector<1x256xf32>
    %c8 = arith.constant 8 : index
    %132 = memref.load %arg2[%c8] : memref<98xf32, #tpu.memory_space<smem>>
    %c0_52 = arith.constant 0 : index
    %c17 = arith.constant 17 : index
    %133 = vector.load %arg5[%c0_52, %c17] : memref<1x358xf32, #tpu.memory_space<vmem>>, vector<1x256xf32>
    %134 = vector.broadcast %132 : f32 to vector<1x256xf32>
    %135 = arith.mulf %134, %133 : vector<1x256xf32>
    %136 = arith.addf %131, %135 : vector<1x256xf32>
    %c57 = arith.constant 57 : index
    %137 = memref.load %arg2[%c57] : memref<98xf32, #tpu.memory_space<smem>>
    %c0_53 = arith.constant 0 : index
    %c17_54 = arith.constant 17 : index
    %138 = vector.load %arg6[%c0_53, %c17_54] : memref<1x358xf32, #tpu.memory_space<vmem>>, vector<1x256xf32>
    %139 = vector.broadcast %137 : f32 to vector<1x256xf32>
    %140 = arith.mulf %139, %138 : vector<1x256xf32>
    %141 = arith.addf %136, %140 : vector<1x256xf32>
    %c15 = arith.constant 15 : index
    %142 = memref.load %arg2[%c15] : memref<98xf32, #tpu.memory_space<smem>>
    %c0_55 = arith.constant 0 : index
    %c33 = arith.constant 33 : index
    %143 = vector.load %arg5[%c0_55, %c33] : memref<1x358xf32, #tpu.memory_space<vmem>>, vector<1x256xf32>
    %144 = vector.broadcast %142 : f32 to vector<1x256xf32>
    %145 = arith.mulf %144, %143 : vector<1x256xf32>
    %146 = arith.addf %141, %145 : vector<1x256xf32>
    %c64_56 = arith.constant 64 : index
    %147 = memref.load %arg2[%c64_56] : memref<98xf32, #tpu.memory_space<smem>>
    %c0_57 = arith.constant 0 : index
    %c33_58 = arith.constant 33 : index
    %148 = vector.load %arg6[%c0_57, %c33_58] : memref<1x358xf32, #tpu.memory_space<vmem>>, vector<1x256xf32>
    %149 = vector.broadcast %147 : f32 to vector<1x256xf32>
    %150 = arith.mulf %149, %148 : vector<1x256xf32>
    %151 = arith.addf %146, %150 : vector<1x256xf32>
    %c22 = arith.constant 22 : index
    %152 = memref.load %arg2[%c22] : memref<98xf32, #tpu.memory_space<smem>>
    %c0_59 = arith.constant 0 : index
    %c49_60 = arith.constant 49 : index
    %153 = vector.load %arg5[%c0_59, %c49_60] : memref<1x358xf32, #tpu.memory_space<vmem>>, vector<1x256xf32>
    %154 = vector.broadcast %152 : f32 to vector<1x256xf32>
    %155 = arith.mulf %154, %153 : vector<1x256xf32>
    %156 = arith.addf %151, %155 : vector<1x256xf32>
    %c71 = arith.constant 71 : index
    %157 = memref.load %arg2[%c71] : memref<98xf32, #tpu.memory_space<smem>>
    %c0_61 = arith.constant 0 : index
    %c49_62 = arith.constant 49 : index
    %158 = vector.load %arg6[%c0_61, %c49_62] : memref<1x358xf32, #tpu.memory_space<vmem>>, vector<1x256xf32>
    %159 = vector.broadcast %157 : f32 to vector<1x256xf32>
    %160 = arith.mulf %159, %158 : vector<1x256xf32>
    %161 = arith.addf %156, %160 : vector<1x256xf32>
    %c29 = arith.constant 29 : index
    %162 = memref.load %arg2[%c29] : memref<98xf32, #tpu.memory_space<smem>>
    %c0_63 = arith.constant 0 : index
    %c65 = arith.constant 65 : index
    %163 = vector.load %arg5[%c0_63, %c65] : memref<1x358xf32, #tpu.memory_space<vmem>>, vector<1x256xf32>
    %164 = vector.broadcast %162 : f32 to vector<1x256xf32>
    %165 = arith.mulf %164, %163 : vector<1x256xf32>
    %166 = arith.addf %161, %165 : vector<1x256xf32>
    %c78 = arith.constant 78 : index
    %167 = memref.load %arg2[%c78] : memref<98xf32, #tpu.memory_space<smem>>
    %c0_64 = arith.constant 0 : index
    %c65_65 = arith.constant 65 : index
    %168 = vector.load %arg6[%c0_64, %c65_65] : memref<1x358xf32, #tpu.memory_space<vmem>>, vector<1x256xf32>
    %169 = vector.broadcast %167 : f32 to vector<1x256xf32>
    %170 = arith.mulf %169, %168 : vector<1x256xf32>
    %171 = arith.addf %166, %170 : vector<1x256xf32>
    %c36 = arith.constant 36 : index
    %172 = memref.load %arg2[%c36] : memref<98xf32, #tpu.memory_space<smem>>
    %c0_66 = arith.constant 0 : index
    %c81 = arith.constant 81 : index
    %173 = vector.load %arg5[%c0_66, %c81] : memref<1x358xf32, #tpu.memory_space<vmem>>, vector<1x256xf32>
    %174 = vector.broadcast %172 : f32 to vector<1x256xf32>
    %175 = arith.mulf %174, %173 : vector<1x256xf32>
    %176 = arith.addf %171, %175 : vector<1x256xf32>
    %c85 = arith.constant 85 : index
    %177 = memref.load %arg2[%c85] : memref<98xf32, #tpu.memory_space<smem>>
    %c0_67 = arith.constant 0 : index
    %c81_68 = arith.constant 81 : index
    %178 = vector.load %arg6[%c0_67, %c81_68] : memref<1x358xf32, #tpu.memory_space<vmem>>, vector<1x256xf32>
    %179 = vector.broadcast %177 : f32 to vector<1x256xf32>
    %180 = arith.mulf %179, %178 : vector<1x256xf32>
    %181 = arith.addf %176, %180 : vector<1x256xf32>
    %c43 = arith.constant 43 : index
    %182 = memref.load %arg2[%c43] : memref<98xf32, #tpu.memory_space<smem>>
    %c0_69 = arith.constant 0 : index
    %c97 = arith.constant 97 : index
    %183 = vector.load %arg5[%c0_69, %c97] : memref<1x358xf32, #tpu.memory_space<vmem>>, vector<1x256xf32>
    %184 = vector.broadcast %182 : f32 to vector<1x256xf32>
    %185 = arith.mulf %184, %183 : vector<1x256xf32>
    %186 = arith.addf %181, %185 : vector<1x256xf32>
    %c92 = arith.constant 92 : index
    %187 = memref.load %arg2[%c92] : memref<98xf32, #tpu.memory_space<smem>>
    %c0_70 = arith.constant 0 : index
    %c97_71 = arith.constant 97 : index
    %188 = vector.load %arg6[%c0_70, %c97_71] : memref<1x358xf32, #tpu.memory_space<vmem>>, vector<1x256xf32>
    %189 = vector.broadcast %187 : f32 to vector<1x256xf32>
    %190 = arith.mulf %189, %188 : vector<1x256xf32>
    %191 = arith.addf %186, %190 : vector<1x256xf32>
    %cst_72 = arith.constant 0.000000e+00 : f32
    %192 = vector.broadcast %cst_72 : f32 to vector<1x256xf32>
    %193 = arith.select %15, %191, %192 : vector<1x256xi1>, vector<1x256xf32>
    %194 = arith.addf %120, %193 : vector<1x256xf32>
    %cst_73 = arith.constant 0.000000e+00 : f32
    %195 = vector.broadcast %cst_73 : f32 to vector<1x256xf32>
    %c2 = arith.constant 2 : index
    %196 = memref.load %arg2[%c2] : memref<98xf32, #tpu.memory_space<smem>>
    %c0_74 = arith.constant 0 : index
    %c2_75 = arith.constant 2 : index
    %197 = vector.load %arg5[%c0_74, %c2_75] : memref<1x358xf32, #tpu.memory_space<vmem>>, vector<1x256xf32>
    %198 = vector.broadcast %196 : f32 to vector<1x256xf32>
    %199 = arith.mulf %198, %197 : vector<1x256xf32>
    %200 = arith.addf %195, %199 : vector<1x256xf32>
    %c51_76 = arith.constant 51 : index
    %201 = memref.load %arg2[%c51_76] : memref<98xf32, #tpu.memory_space<smem>>
    %c0_77 = arith.constant 0 : index
    %c2_78 = arith.constant 2 : index
    %202 = vector.load %arg6[%c0_77, %c2_78] : memref<1x358xf32, #tpu.memory_space<vmem>>, vector<1x256xf32>
    %203 = vector.broadcast %201 : f32 to vector<1x256xf32>
    %204 = arith.mulf %203, %202 : vector<1x256xf32>
    %205 = arith.addf %200, %204 : vector<1x256xf32>
    %c9 = arith.constant 9 : index
    %206 = memref.load %arg2[%c9] : memref<98xf32, #tpu.memory_space<smem>>
    %c0_79 = arith.constant 0 : index
    %c18 = arith.constant 18 : index
    %207 = vector.load %arg5[%c0_79, %c18] : memref<1x358xf32, #tpu.memory_space<vmem>>, vector<1x256xf32>
    %208 = vector.broadcast %206 : f32 to vector<1x256xf32>
    %209 = arith.mulf %208, %207 : vector<1x256xf32>
    %210 = arith.addf %205, %209 : vector<1x256xf32>
    %c58 = arith.constant 58 : index
    %211 = memref.load %arg2[%c58] : memref<98xf32, #tpu.memory_space<smem>>
    %c0_80 = arith.constant 0 : index
    %c18_81 = arith.constant 18 : index
    %212 = vector.load %arg6[%c0_80, %c18_81] : memref<1x358xf32, #tpu.memory_space<vmem>>, vector<1x256xf32>
    %213 = vector.broadcast %211 : f32 to vector<1x256xf32>
    %214 = arith.mulf %213, %212 : vector<1x256xf32>
    %215 = arith.addf %210, %214 : vector<1x256xf32>
    %c16_82 = arith.constant 16 : index
    %216 = memref.load %arg2[%c16_82] : memref<98xf32, #tpu.memory_space<smem>>
    %c0_83 = arith.constant 0 : index
    %c34 = arith.constant 34 : index
    %217 = vector.load %arg5[%c0_83, %c34] : memref<1x358xf32, #tpu.memory_space<vmem>>, vector<1x256xf32>
    %218 = vector.broadcast %216 : f32 to vector<1x256xf32>
    %219 = arith.mulf %218, %217 : vector<1x256xf32>
    %220 = arith.addf %215, %219 : vector<1x256xf32>
    %c65_84 = arith.constant 65 : index
    %221 = memref.load %arg2[%c65_84] : memref<98xf32, #tpu.memory_space<smem>>
    %c0_85 = arith.constant 0 : index
    %c34_86 = arith.constant 34 : index
    %222 = vector.load %arg6[%c0_85, %c34_86] : memref<1x358xf32, #tpu.memory_space<vmem>>, vector<1x256xf32>
    %223 = vector.broadcast %221 : f32 to vector<1x256xf32>
    %224 = arith.mulf %223, %222 : vector<1x256xf32>
    %225 = arith.addf %220, %224 : vector<1x256xf32>
    %c23 = arith.constant 23 : index
    %226 = memref.load %arg2[%c23] : memref<98xf32, #tpu.memory_space<smem>>
    %c0_87 = arith.constant 0 : index
    %c50_88 = arith.constant 50 : index
    %227 = vector.load %arg5[%c0_87, %c50_88] : memref<1x358xf32, #tpu.memory_space<vmem>>, vector<1x256xf32>
    %228 = vector.broadcast %226 : f32 to vector<1x256xf32>
    %229 = arith.mulf %228, %227 : vector<1x256xf32>
    %230 = arith.addf %225, %229 : vector<1x256xf32>
    %c72 = arith.constant 72 : index
    %231 = memref.load %arg2[%c72] : memref<98xf32, #tpu.memory_space<smem>>
    %c0_89 = arith.constant 0 : index
    %c50_90 = arith.constant 50 : index
    %232 = vector.load %arg6[%c0_89, %c50_90] : memref<1x358xf32, #tpu.memory_space<vmem>>, vector<1x256xf32>
    %233 = vector.broadcast %231 : f32 to vector<1x256xf32>
    %234 = arith.mulf %233, %232 : vector<1x256xf32>
    %235 = arith.addf %230, %234 : vector<1x256xf32>
    %c30 = arith.constant 30 : index
    %236 = memref.load %arg2[%c30] : memref<98xf32, #tpu.memory_space<smem>>
    %c0_91 = arith.constant 0 : index
    %c66 = arith.constant 66 : index
    %237 = vector.load %arg5[%c0_91, %c66] : memref<1x358xf32, #tpu.memory_space<vmem>>, vector<1x256xf32>
    %238 = vector.broadcast %236 : f32 to vector<1x256xf32>
    %239 = arith.mulf %238, %237 : vector<1x256xf32>
    %240 = arith.addf %235, %239 : vector<1x256xf32>
    %c79 = arith.constant 79 : index
    %241 = memref.load %arg2[%c79] : memref<98xf32, #tpu.memory_space<smem>>
    %c0_92 = arith.constant 0 : index
    %c66_93 = arith.constant 66 : index
    %242 = vector.load %arg6[%c0_92, %c66_93] : memref<1x358xf32, #tpu.memory_space<vmem>>, vector<1x256xf32>
    %243 = vector.broadcast %241 : f32 to vector<1x256xf32>
    %244 = arith.mulf %243, %242 : vector<1x256xf32>
    %245 = arith.addf %240, %244 : vector<1x256xf32>
    %c37 = arith.constant 37 : index
    %246 = memref.load %arg2[%c37] : memref<98xf32, #tpu.memory_space<smem>>
    %c0_94 = arith.constant 0 : index
    %c82 = arith.constant 82 : index
    %247 = vector.load %arg5[%c0_94, %c82] : memref<1x358xf32, #tpu.memory_space<vmem>>, vector<1x256xf32>
    %248 = vector.broadcast %246 : f32 to vector<1x256xf32>
    %249 = arith.mulf %248, %247 : vector<1x256xf32>
    %250 = arith.addf %245, %249 : vector<1x256xf32>
    %c86 = arith.constant 86 : index
    %251 = memref.load %arg2[%c86] : memref<98xf32, #tpu.memory_space<smem>>
    %c0_95 = arith.constant 0 : index
    %c82_96 = arith.constant 82 : index
    %252 = vector.load %arg6[%c0_95, %c82_96] : memref<1x358xf32, #tpu.memory_space<vmem>>, vector<1x256xf32>
    %253 = vector.broadcast %251 : f32 to vector<1x256xf32>
    %254 = arith.mulf %253, %252 : vector<1x256xf32>
    %255 = arith.addf %250, %254 : vector<1x256xf32>
    %c44 = arith.constant 44 : index
    %256 = memref.load %arg2[%c44] : memref<98xf32, #tpu.memory_space<smem>>
    %c0_97 = arith.constant 0 : index
    %c98 = arith.constant 98 : index
    %257 = vector.load %arg5[%c0_97, %c98] : memref<1x358xf32, #tpu.memory_space<vmem>>, vector<1x256xf32>
    %258 = vector.broadcast %256 : f32 to vector<1x256xf32>
    %259 = arith.mulf %258, %257 : vector<1x256xf32>
    %260 = arith.addf %255, %259 : vector<1x256xf32>
    %c93 = arith.constant 93 : index
    %261 = memref.load %arg2[%c93] : memref<98xf32, #tpu.memory_space<smem>>
    %c0_98 = arith.constant 0 : index
    %c98_99 = arith.constant 98 : index
    %262 = vector.load %arg6[%c0_98, %c98_99] : memref<1x358xf32, #tpu.memory_space<vmem>>, vector<1x256xf32>
    %263 = vector.broadcast %261 : f32 to vector<1x256xf32>
    %264 = arith.mulf %263, %262 : vector<1x256xf32>
    %265 = arith.addf %260, %264 : vector<1x256xf32>
    %cst_100 = arith.constant 0.000000e+00 : f32
    %266 = vector.broadcast %cst_100 : f32 to vector<1x256xf32>
    %267 = arith.select %20, %265, %266 : vector<1x256xi1>, vector<1x256xf32>
    %268 = arith.addf %194, %267 : vector<1x256xf32>
    %cst_101 = arith.constant 0.000000e+00 : f32
    %269 = vector.broadcast %cst_101 : f32 to vector<1x256xf32>
    %c3 = arith.constant 3 : index
    %270 = memref.load %arg2[%c3] : memref<98xf32, #tpu.memory_space<smem>>
    %c0_102 = arith.constant 0 : index
    %c3_103 = arith.constant 3 : index
    %271 = vector.load %arg5[%c0_102, %c3_103] : memref<1x358xf32, #tpu.memory_space<vmem>>, vector<1x256xf32>
    %272 = vector.broadcast %270 : f32 to vector<1x256xf32>
    %273 = arith.mulf %272, %271 : vector<1x256xf32>
    %274 = arith.addf %269, %273 : vector<1x256xf32>
    %c52 = arith.constant 52 : index
    %275 = memref.load %arg2[%c52] : memref<98xf32, #tpu.memory_space<smem>>
    %c0_104 = arith.constant 0 : index
    %c3_105 = arith.constant 3 : index
    %276 = vector.load %arg6[%c0_104, %c3_105] : memref<1x358xf32, #tpu.memory_space<vmem>>, vector<1x256xf32>
    %277 = vector.broadcast %275 : f32 to vector<1x256xf32>
    %278 = arith.mulf %277, %276 : vector<1x256xf32>
    %279 = arith.addf %274, %278 : vector<1x256xf32>
    %c10 = arith.constant 10 : index
    %280 = memref.load %arg2[%c10] : memref<98xf32, #tpu.memory_space<smem>>
    %c0_106 = arith.constant 0 : index
    %c19 = arith.constant 19 : index
    %281 = vector.load %arg5[%c0_106, %c19] : memref<1x358xf32, #tpu.memory_space<vmem>>, vector<1x256xf32>
    %282 = vector.broadcast %280 : f32 to vector<1x256xf32>
    %283 = arith.mulf %282, %281 : vector<1x256xf32>
    %284 = arith.addf %279, %283 : vector<1x256xf32>
    %c59 = arith.constant 59 : index
    %285 = memref.load %arg2[%c59] : memref<98xf32, #tpu.memory_space<smem>>
    %c0_107 = arith.constant 0 : index
    %c19_108 = arith.constant 19 : index
    %286 = vector.load %arg6[%c0_107, %c19_108] : memref<1x358xf32, #tpu.memory_space<vmem>>, vector<1x256xf32>
    %287 = vector.broadcast %285 : f32 to vector<1x256xf32>
    %288 = arith.mulf %287, %286 : vector<1x256xf32>
    %289 = arith.addf %284, %288 : vector<1x256xf32>
    %c17_109 = arith.constant 17 : index
    %290 = memref.load %arg2[%c17_109] : memref<98xf32, #tpu.memory_space<smem>>
    %c0_110 = arith.constant 0 : index
    %c35_111 = arith.constant 35 : index
    %291 = vector.load %arg5[%c0_110, %c35_111] : memref<1x358xf32, #tpu.memory_space<vmem>>, vector<1x256xf32>
    %292 = vector.broadcast %290 : f32 to vector<1x256xf32>
    %293 = arith.mulf %292, %291 : vector<1x256xf32>
    %294 = arith.addf %289, %293 : vector<1x256xf32>
    %c66_112 = arith.constant 66 : index
    %295 = memref.load %arg2[%c66_112] : memref<98xf32, #tpu.memory_space<smem>>
    %c0_113 = arith.constant 0 : index
    %c35_114 = arith.constant 35 : index
    %296 = vector.load %arg6[%c0_113, %c35_114] : memref<1x358xf32, #tpu.memory_space<vmem>>, vector<1x256xf32>
    %297 = vector.broadcast %295 : f32 to vector<1x256xf32>
    %298 = arith.mulf %297, %296 : vector<1x256xf32>
    %299 = arith.addf %294, %298 : vector<1x256xf32>
    %c24 = arith.constant 24 : index
    %300 = memref.load %arg2[%c24] : memref<98xf32, #tpu.memory_space<smem>>
    %c0_115 = arith.constant 0 : index
    %c51_116 = arith.constant 51 : index
    %301 = vector.load %arg5[%c0_115, %c51_116] : memref<1x358xf32, #tpu.memory_space<vmem>>, vector<1x256xf32>
    %302 = vector.broadcast %300 : f32 to vector<1x256xf32>
    %303 = arith.mulf %302, %301 : vector<1x256xf32>
    %304 = arith.addf %299, %303 : vector<1x256xf32>
    %c73 = arith.constant 73 : index
    %305 = memref.load %arg2[%c73] : memref<98xf32, #tpu.memory_space<smem>>
    %c0_117 = arith.constant 0 : index
    %c51_118 = arith.constant 51 : index
    %306 = vector.load %arg6[%c0_117, %c51_118] : memref<1x358xf32, #tpu.memory_space<vmem>>, vector<1x256xf32>
    %307 = vector.broadcast %305 : f32 to vector<1x256xf32>
    %308 = arith.mulf %307, %306 : vector<1x256xf32>
    %309 = arith.addf %304, %308 : vector<1x256xf32>
    %c31 = arith.constant 31 : index
    %310 = memref.load %arg2[%c31] : memref<98xf32, #tpu.memory_space<smem>>
    %c0_119 = arith.constant 0 : index
    %c67 = arith.constant 67 : index
    %311 = vector.load %arg5[%c0_119, %c67] : memref<1x358xf32, #tpu.memory_space<vmem>>, vector<1x256xf32>
    %312 = vector.broadcast %310 : f32 to vector<1x256xf32>
    %313 = arith.mulf %312, %311 : vector<1x256xf32>
    %314 = arith.addf %309, %313 : vector<1x256xf32>
    %c80_120 = arith.constant 80 : index
    %315 = memref.load %arg2[%c80_120] : memref<98xf32, #tpu.memory_space<smem>>
    %c0_121 = arith.constant 0 : index
    %c67_122 = arith.constant 67 : index
    %316 = vector.load %arg6[%c0_121, %c67_122] : memref<1x358xf32, #tpu.memory_space<vmem>>, vector<1x256xf32>
    %317 = vector.broadcast %315 : f32 to vector<1x256xf32>
    %318 = arith.mulf %317, %316 : vector<1x256xf32>
    %319 = arith.addf %314, %318 : vector<1x256xf32>
    %c38 = arith.constant 38 : index
    %320 = memref.load %arg2[%c38] : memref<98xf32, #tpu.memory_space<smem>>
    %c0_123 = arith.constant 0 : index
    %c83 = arith.constant 83 : index
    %321 = vector.load %arg5[%c0_123, %c83] : memref<1x358xf32, #tpu.memory_space<vmem>>, vector<1x256xf32>
    %322 = vector.broadcast %320 : f32 to vector<1x256xf32>
    %323 = arith.mulf %322, %321 : vector<1x256xf32>
    %324 = arith.addf %319, %323 : vector<1x256xf32>
    %c87 = arith.constant 87 : index
    %325 = memref.load %arg2[%c87] : memref<98xf32, #tpu.memory_space<smem>>
    %c0_124 = arith.constant 0 : index
    %c83_125 = arith.constant 83 : index
    %326 = vector.load %arg6[%c0_124, %c83_125] : memref<1x358xf32, #tpu.memory_space<vmem>>, vector<1x256xf32>
    %327 = vector.broadcast %325 : f32 to vector<1x256xf32>
    %328 = arith.mulf %327, %326 : vector<1x256xf32>
    %329 = arith.addf %324, %328 : vector<1x256xf32>
    %c45 = arith.constant 45 : index
    %330 = memref.load %arg2[%c45] : memref<98xf32, #tpu.memory_space<smem>>
    %c0_126 = arith.constant 0 : index
    %c99 = arith.constant 99 : index
    %331 = vector.load %arg5[%c0_126, %c99] : memref<1x358xf32, #tpu.memory_space<vmem>>, vector<1x256xf32>
    %332 = vector.broadcast %330 : f32 to vector<1x256xf32>
    %333 = arith.mulf %332, %331 : vector<1x256xf32>
    %334 = arith.addf %329, %333 : vector<1x256xf32>
    %c94 = arith.constant 94 : index
    %335 = memref.load %arg2[%c94] : memref<98xf32, #tpu.memory_space<smem>>
    %c0_127 = arith.constant 0 : index
    %c99_128 = arith.constant 99 : index
    %336 = vector.load %arg6[%c0_127, %c99_128] : memref<1x358xf32, #tpu.memory_space<vmem>>, vector<1x256xf32>
    %337 = vector.broadcast %335 : f32 to vector<1x256xf32>
    %338 = arith.mulf %337, %336 : vector<1x256xf32>
    %339 = arith.addf %334, %338 : vector<1x256xf32>
    %340 = arith.addf %268, %339 : vector<1x256xf32>
    %cst_129 = arith.constant 0.000000e+00 : f32
    %341 = vector.broadcast %cst_129 : f32 to vector<1x256xf32>
    %c4 = arith.constant 4 : index
    %342 = memref.load %arg2[%c4] : memref<98xf32, #tpu.memory_space<smem>>
    %c0_130 = arith.constant 0 : index
    %c4_131 = arith.constant 4 : index
    %343 = vector.load %arg5[%c0_130, %c4_131] : memref<1x358xf32, #tpu.memory_space<vmem>>, vector<1x256xf32>
    %344 = vector.broadcast %342 : f32 to vector<1x256xf32>
    %345 = arith.mulf %344, %343 : vector<1x256xf32>
    %346 = arith.addf %341, %345 : vector<1x256xf32>
    %c53 = arith.constant 53 : index
    %347 = memref.load %arg2[%c53] : memref<98xf32, #tpu.memory_space<smem>>
    %c0_132 = arith.constant 0 : index
    %c4_133 = arith.constant 4 : index
    %348 = vector.load %arg6[%c0_132, %c4_133] : memref<1x358xf32, #tpu.memory_space<vmem>>, vector<1x256xf32>
    %349 = vector.broadcast %347 : f32 to vector<1x256xf32>
    %350 = arith.mulf %349, %348 : vector<1x256xf32>
    %351 = arith.addf %346, %350 : vector<1x256xf32>
    %c11 = arith.constant 11 : index
    %352 = memref.load %arg2[%c11] : memref<98xf32, #tpu.memory_space<smem>>
    %c0_134 = arith.constant 0 : index
    %c20 = arith.constant 20 : index
    %353 = vector.load %arg5[%c0_134, %c20] : memref<1x358xf32, #tpu.memory_space<vmem>>, vector<1x256xf32>
    %354 = vector.broadcast %352 : f32 to vector<1x256xf32>
    %355 = arith.mulf %354, %353 : vector<1x256xf32>
    %356 = arith.addf %351, %355 : vector<1x256xf32>
    %c60 = arith.constant 60 : index
    %357 = memref.load %arg2[%c60] : memref<98xf32, #tpu.memory_space<smem>>
    %c0_135 = arith.constant 0 : index
    %c20_136 = arith.constant 20 : index
    %358 = vector.load %arg6[%c0_135, %c20_136] : memref<1x358xf32, #tpu.memory_space<vmem>>, vector<1x256xf32>
    %359 = vector.broadcast %357 : f32 to vector<1x256xf32>
    %360 = arith.mulf %359, %358 : vector<1x256xf32>
    %361 = arith.addf %356, %360 : vector<1x256xf32>
    %c18_137 = arith.constant 18 : index
    %362 = memref.load %arg2[%c18_137] : memref<98xf32, #tpu.memory_space<smem>>
    %c0_138 = arith.constant 0 : index
    %c36_139 = arith.constant 36 : index
    %363 = vector.load %arg5[%c0_138, %c36_139] : memref<1x358xf32, #tpu.memory_space<vmem>>, vector<1x256xf32>
    %364 = vector.broadcast %362 : f32 to vector<1x256xf32>
    %365 = arith.mulf %364, %363 : vector<1x256xf32>
    %366 = arith.addf %361, %365 : vector<1x256xf32>
    %c67_140 = arith.constant 67 : index
    %367 = memref.load %arg2[%c67_140] : memref<98xf32, #tpu.memory_space<smem>>
    %c0_141 = arith.constant 0 : index
    %c36_142 = arith.constant 36 : index
    %368 = vector.load %arg6[%c0_141, %c36_142] : memref<1x358xf32, #tpu.memory_space<vmem>>, vector<1x256xf32>
    %369 = vector.broadcast %367 : f32 to vector<1x256xf32>
    %370 = arith.mulf %369, %368 : vector<1x256xf32>
    %371 = arith.addf %366, %370 : vector<1x256xf32>
    %c25 = arith.constant 25 : index
    %372 = memref.load %arg2[%c25] : memref<98xf32, #tpu.memory_space<smem>>
    %c0_143 = arith.constant 0 : index
    %c52_144 = arith.constant 52 : index
    %373 = vector.load %arg5[%c0_143, %c52_144] : memref<1x358xf32, #tpu.memory_space<vmem>>, vector<1x256xf32>
    %374 = vector.broadcast %372 : f32 to vector<1x256xf32>
    %375 = arith.mulf %374, %373 : vector<1x256xf32>
    %376 = arith.addf %371, %375 : vector<1x256xf32>
    %c74 = arith.constant 74 : index
    %377 = memref.load %arg2[%c74] : memref<98xf32, #tpu.memory_space<smem>>
    %c0_145 = arith.constant 0 : index
    %c52_146 = arith.constant 52 : index
    %378 = vector.load %arg6[%c0_145, %c52_146] : memref<1x358xf32, #tpu.memory_space<vmem>>, vector<1x256xf32>
    %379 = vector.broadcast %377 : f32 to vector<1x256xf32>
    %380 = arith.mulf %379, %378 : vector<1x256xf32>
    %381 = arith.addf %376, %380 : vector<1x256xf32>
    %c32_147 = arith.constant 32 : index
    %382 = memref.load %arg2[%c32_147] : memref<98xf32, #tpu.memory_space<smem>>
    %c0_148 = arith.constant 0 : index
    %c68 = arith.constant 68 : index
    %383 = vector.load %arg5[%c0_148, %c68] : memref<1x358xf32, #tpu.memory_space<vmem>>, vector<1x256xf32>
    %384 = vector.broadcast %382 : f32 to vector<1x256xf32>
    %385 = arith.mulf %384, %383 : vector<1x256xf32>
    %386 = arith.addf %381, %385 : vector<1x256xf32>
    %c81_149 = arith.constant 81 : index
    %387 = memref.load %arg2[%c81_149] : memref<98xf32, #tpu.memory_space<smem>>
    %c0_150 = arith.constant 0 : index
    %c68_151 = arith.constant 68 : index
    %388 = vector.load %arg6[%c0_150, %c68_151] : memref<1x358xf32, #tpu.memory_space<vmem>>, vector<1x256xf32>
    %389 = vector.broadcast %387 : f32 to vector<1x256xf32>
    %390 = arith.mulf %389, %388 : vector<1x256xf32>
    %391 = arith.addf %386, %390 : vector<1x256xf32>
    %c39 = arith.constant 39 : index
    %392 = memref.load %arg2[%c39] : memref<98xf32, #tpu.memory_space<smem>>
    %c0_152 = arith.constant 0 : index
    %c84_153 = arith.constant 84 : index
    %393 = vector.load %arg5[%c0_152, %c84_153] : memref<1x358xf32, #tpu.memory_space<vmem>>, vector<1x256xf32>
    %394 = vector.broadcast %392 : f32 to vector<1x256xf32>
    %395 = arith.mulf %394, %393 : vector<1x256xf32>
    %396 = arith.addf %391, %395 : vector<1x256xf32>
    %c88 = arith.constant 88 : index
    %397 = memref.load %arg2[%c88] : memref<98xf32, #tpu.memory_space<smem>>
    %c0_154 = arith.constant 0 : index
    %c84_155 = arith.constant 84 : index
    %398 = vector.load %arg6[%c0_154, %c84_155] : memref<1x358xf32, #tpu.memory_space<vmem>>, vector<1x256xf32>
    %399 = vector.broadcast %397 : f32 to vector<1x256xf32>
    %400 = arith.mulf %399, %398 : vector<1x256xf32>
    %401 = arith.addf %396, %400 : vector<1x256xf32>
    %c46 = arith.constant 46 : index
    %402 = memref.load %arg2[%c46] : memref<98xf32, #tpu.memory_space<smem>>
    %c0_156 = arith.constant 0 : index
    %c100 = arith.constant 100 : index
    %403 = vector.load %arg5[%c0_156, %c100] : memref<1x358xf32, #tpu.memory_space<vmem>>, vector<1x256xf32>
    %404 = vector.broadcast %402 : f32 to vector<1x256xf32>
    %405 = arith.mulf %404, %403 : vector<1x256xf32>
    %406 = arith.addf %401, %405 : vector<1x256xf32>
    %c95 = arith.constant 95 : index
    %407 = memref.load %arg2[%c95] : memref<98xf32, #tpu.memory_space<smem>>
    %c0_157 = arith.constant 0 : index
    %c100_158 = arith.constant 100 : index
    %408 = vector.load %arg6[%c0_157, %c100_158] : memref<1x358xf32, #tpu.memory_space<vmem>>, vector<1x256xf32>
    %409 = vector.broadcast %407 : f32 to vector<1x256xf32>
    %410 = arith.mulf %409, %408 : vector<1x256xf32>
    %411 = arith.addf %406, %410 : vector<1x256xf32>
    %cst_159 = arith.constant 0.000000e+00 : f32
    %412 = vector.broadcast %cst_159 : f32 to vector<1x256xf32>
    %413 = arith.select %25, %411, %412 : vector<1x256xi1>, vector<1x256xf32>
    %414 = arith.addf %340, %413 : vector<1x256xf32>
    %cst_160 = arith.constant 0.000000e+00 : f32
    %415 = vector.broadcast %cst_160 : f32 to vector<1x256xf32>
    %c5 = arith.constant 5 : index
    %416 = memref.load %arg2[%c5] : memref<98xf32, #tpu.memory_space<smem>>
    %c0_161 = arith.constant 0 : index
    %c5_162 = arith.constant 5 : index
    %417 = vector.load %arg5[%c0_161, %c5_162] : memref<1x358xf32, #tpu.memory_space<vmem>>, vector<1x256xf32>
    %418 = vector.broadcast %416 : f32 to vector<1x256xf32>
    %419 = arith.mulf %418, %417 : vector<1x256xf32>
    %420 = arith.addf %415, %419 : vector<1x256xf32>
    %c54 = arith.constant 54 : index
    %421 = memref.load %arg2[%c54] : memref<98xf32, #tpu.memory_space<smem>>
    %c0_163 = arith.constant 0 : index
    %c5_164 = arith.constant 5 : index
    %422 = vector.load %arg6[%c0_163, %c5_164] : memref<1x358xf32, #tpu.memory_space<vmem>>, vector<1x256xf32>
    %423 = vector.broadcast %421 : f32 to vector<1x256xf32>
    %424 = arith.mulf %423, %422 : vector<1x256xf32>
    %425 = arith.addf %420, %424 : vector<1x256xf32>
    %c12 = arith.constant 12 : index
    %426 = memref.load %arg2[%c12] : memref<98xf32, #tpu.memory_space<smem>>
    %c0_165 = arith.constant 0 : index
    %c21_166 = arith.constant 21 : index
    %427 = vector.load %arg5[%c0_165, %c21_166] : memref<1x358xf32, #tpu.memory_space<vmem>>, vector<1x256xf32>
    %428 = vector.broadcast %426 : f32 to vector<1x256xf32>
    %429 = arith.mulf %428, %427 : vector<1x256xf32>
    %430 = arith.addf %425, %429 : vector<1x256xf32>
    %c61 = arith.constant 61 : index
    %431 = memref.load %arg2[%c61] : memref<98xf32, #tpu.memory_space<smem>>
    %c0_167 = arith.constant 0 : index
    %c21_168 = arith.constant 21 : index
    %432 = vector.load %arg6[%c0_167, %c21_168] : memref<1x358xf32, #tpu.memory_space<vmem>>, vector<1x256xf32>
    %433 = vector.broadcast %431 : f32 to vector<1x256xf32>
    %434 = arith.mulf %433, %432 : vector<1x256xf32>
    %435 = arith.addf %430, %434 : vector<1x256xf32>
    %c19_169 = arith.constant 19 : index
    %436 = memref.load %arg2[%c19_169] : memref<98xf32, #tpu.memory_space<smem>>
    %c0_170 = arith.constant 0 : index
    %c37_171 = arith.constant 37 : index
    %437 = vector.load %arg5[%c0_170, %c37_171] : memref<1x358xf32, #tpu.memory_space<vmem>>, vector<1x256xf32>
    %438 = vector.broadcast %436 : f32 to vector<1x256xf32>
    %439 = arith.mulf %438, %437 : vector<1x256xf32>
    %440 = arith.addf %435, %439 : vector<1x256xf32>
    %c68_172 = arith.constant 68 : index
    %441 = memref.load %arg2[%c68_172] : memref<98xf32, #tpu.memory_space<smem>>
    %c0_173 = arith.constant 0 : index
    %c37_174 = arith.constant 37 : index
    %442 = vector.load %arg6[%c0_173, %c37_174] : memref<1x358xf32, #tpu.memory_space<vmem>>, vector<1x256xf32>
    %443 = vector.broadcast %441 : f32 to vector<1x256xf32>
    %444 = arith.mulf %443, %442 : vector<1x256xf32>
    %445 = arith.addf %440, %444 : vector<1x256xf32>
    %c26 = arith.constant 26 : index
    %446 = memref.load %arg2[%c26] : memref<98xf32, #tpu.memory_space<smem>>
    %c0_175 = arith.constant 0 : index
    %c53_176 = arith.constant 53 : index
    %447 = vector.load %arg5[%c0_175, %c53_176] : memref<1x358xf32, #tpu.memory_space<vmem>>, vector<1x256xf32>
    %448 = vector.broadcast %446 : f32 to vector<1x256xf32>
    %449 = arith.mulf %448, %447 : vector<1x256xf32>
    %450 = arith.addf %445, %449 : vector<1x256xf32>
    %c75 = arith.constant 75 : index
    %451 = memref.load %arg2[%c75] : memref<98xf32, #tpu.memory_space<smem>>
    %c0_177 = arith.constant 0 : index
    %c53_178 = arith.constant 53 : index
    %452 = vector.load %arg6[%c0_177, %c53_178] : memref<1x358xf32, #tpu.memory_space<vmem>>, vector<1x256xf32>
    %453 = vector.broadcast %451 : f32 to vector<1x256xf32>
    %454 = arith.mulf %453, %452 : vector<1x256xf32>
    %455 = arith.addf %450, %454 : vector<1x256xf32>
    %c33_179 = arith.constant 33 : index
    %456 = memref.load %arg2[%c33_179] : memref<98xf32, #tpu.memory_space<smem>>
    %c0_180 = arith.constant 0 : index
    %c69 = arith.constant 69 : index
    %457 = vector.load %arg5[%c0_180, %c69] : memref<1x358xf32, #tpu.memory_space<vmem>>, vector<1x256xf32>
    %458 = vector.broadcast %456 : f32 to vector<1x256xf32>
    %459 = arith.mulf %458, %457 : vector<1x256xf32>
    %460 = arith.addf %455, %459 : vector<1x256xf32>
    %c82_181 = arith.constant 82 : index
    %461 = memref.load %arg2[%c82_181] : memref<98xf32, #tpu.memory_space<smem>>
    %c0_182 = arith.constant 0 : index
    %c69_183 = arith.constant 69 : index
    %462 = vector.load %arg6[%c0_182, %c69_183] : memref<1x358xf32, #tpu.memory_space<vmem>>, vector<1x256xf32>
    %463 = vector.broadcast %461 : f32 to vector<1x256xf32>
    %464 = arith.mulf %463, %462 : vector<1x256xf32>
    %465 = arith.addf %460, %464 : vector<1x256xf32>
    %c40 = arith.constant 40 : index
    %466 = memref.load %arg2[%c40] : memref<98xf32, #tpu.memory_space<smem>>
    %c0_184 = arith.constant 0 : index
    %c85_185 = arith.constant 85 : index
    %467 = vector.load %arg5[%c0_184, %c85_185] : memref<1x358xf32, #tpu.memory_space<vmem>>, vector<1x256xf32>
    %468 = vector.broadcast %466 : f32 to vector<1x256xf32>
    %469 = arith.mulf %468, %467 : vector<1x256xf32>
    %470 = arith.addf %465, %469 : vector<1x256xf32>
    %c89 = arith.constant 89 : index
    %471 = memref.load %arg2[%c89] : memref<98xf32, #tpu.memory_space<smem>>
    %c0_186 = arith.constant 0 : index
    %c85_187 = arith.constant 85 : index
    %472 = vector.load %arg6[%c0_186, %c85_187] : memref<1x358xf32, #tpu.memory_space<vmem>>, vector<1x256xf32>
    %473 = vector.broadcast %471 : f32 to vector<1x256xf32>
    %474 = arith.mulf %473, %472 : vector<1x256xf32>
    %475 = arith.addf %470, %474 : vector<1x256xf32>
    %c47 = arith.constant 47 : index
    %476 = memref.load %arg2[%c47] : memref<98xf32, #tpu.memory_space<smem>>
    %c0_188 = arith.constant 0 : index
    %c101 = arith.constant 101 : index
    %477 = vector.load %arg5[%c0_188, %c101] : memref<1x358xf32, #tpu.memory_space<vmem>>, vector<1x256xf32>
    %478 = vector.broadcast %476 : f32 to vector<1x256xf32>
    %479 = arith.mulf %478, %477 : vector<1x256xf32>
    %480 = arith.addf %475, %479 : vector<1x256xf32>
    %c96_189 = arith.constant 96 : index
    %481 = memref.load %arg2[%c96_189] : memref<98xf32, #tpu.memory_space<smem>>
    %c0_190 = arith.constant 0 : index
    %c101_191 = arith.constant 101 : index
    %482 = vector.load %arg6[%c0_190, %c101_191] : memref<1x358xf32, #tpu.memory_space<vmem>>, vector<1x256xf32>
    %483 = vector.broadcast %481 : f32 to vector<1x256xf32>
    %484 = arith.mulf %483, %482 : vector<1x256xf32>
    %485 = arith.addf %480, %484 : vector<1x256xf32>
    %cst_192 = arith.constant 0.000000e+00 : f32
    %486 = vector.broadcast %cst_192 : f32 to vector<1x256xf32>
    %487 = arith.select %30, %485, %486 : vector<1x256xi1>, vector<1x256xf32>
    %488 = arith.addf %414, %487 : vector<1x256xf32>
    %cst_193 = arith.constant 0.000000e+00 : f32
    %489 = vector.broadcast %cst_193 : f32 to vector<1x256xf32>
    %c6 = arith.constant 6 : index
    %490 = memref.load %arg2[%c6] : memref<98xf32, #tpu.memory_space<smem>>
    %c0_194 = arith.constant 0 : index
    %c6_195 = arith.constant 6 : index
    %491 = vector.load %arg5[%c0_194, %c6_195] : memref<1x358xf32, #tpu.memory_space<vmem>>, vector<1x256xf32>
    %492 = vector.broadcast %490 : f32 to vector<1x256xf32>
    %493 = arith.mulf %492, %491 : vector<1x256xf32>
    %494 = arith.addf %489, %493 : vector<1x256xf32>
    %c55 = arith.constant 55 : index
    %495 = memref.load %arg2[%c55] : memref<98xf32, #tpu.memory_space<smem>>
    %c0_196 = arith.constant 0 : index
    %c6_197 = arith.constant 6 : index
    %496 = vector.load %arg6[%c0_196, %c6_197] : memref<1x358xf32, #tpu.memory_space<vmem>>, vector<1x256xf32>
    %497 = vector.broadcast %495 : f32 to vector<1x256xf32>
    %498 = arith.mulf %497, %496 : vector<1x256xf32>
    %499 = arith.addf %494, %498 : vector<1x256xf32>
    %c13 = arith.constant 13 : index
    %500 = memref.load %arg2[%c13] : memref<98xf32, #tpu.memory_space<smem>>
    %c0_198 = arith.constant 0 : index
    %c22_199 = arith.constant 22 : index
    %501 = vector.load %arg5[%c0_198, %c22_199] : memref<1x358xf32, #tpu.memory_space<vmem>>, vector<1x256xf32>
    %502 = vector.broadcast %500 : f32 to vector<1x256xf32>
    %503 = arith.mulf %502, %501 : vector<1x256xf32>
    %504 = arith.addf %499, %503 : vector<1x256xf32>
    %c62 = arith.constant 62 : index
    %505 = memref.load %arg2[%c62] : memref<98xf32, #tpu.memory_space<smem>>
    %c0_200 = arith.constant 0 : index
    %c22_201 = arith.constant 22 : index
    %506 = vector.load %arg6[%c0_200, %c22_201] : memref<1x358xf32, #tpu.memory_space<vmem>>, vector<1x256xf32>
    %507 = vector.broadcast %505 : f32 to vector<1x256xf32>
    %508 = arith.mulf %507, %506 : vector<1x256xf32>
    %509 = arith.addf %504, %508 : vector<1x256xf32>
    %c20_202 = arith.constant 20 : index
    %510 = memref.load %arg2[%c20_202] : memref<98xf32, #tpu.memory_space<smem>>
    %c0_203 = arith.constant 0 : index
    %c38_204 = arith.constant 38 : index
    %511 = vector.load %arg5[%c0_203, %c38_204] : memref<1x358xf32, #tpu.memory_space<vmem>>, vector<1x256xf32>
    %512 = vector.broadcast %510 : f32 to vector<1x256xf32>
    %513 = arith.mulf %512, %511 : vector<1x256xf32>
    %514 = arith.addf %509, %513 : vector<1x256xf32>
    %c69_205 = arith.constant 69 : index
    %515 = memref.load %arg2[%c69_205] : memref<98xf32, #tpu.memory_space<smem>>
    %c0_206 = arith.constant 0 : index
    %c38_207 = arith.constant 38 : index
    %516 = vector.load %arg6[%c0_206, %c38_207] : memref<1x358xf32, #tpu.memory_space<vmem>>, vector<1x256xf32>
    %517 = vector.broadcast %515 : f32 to vector<1x256xf32>
    %518 = arith.mulf %517, %516 : vector<1x256xf32>
    %519 = arith.addf %514, %518 : vector<1x256xf32>
    %c27 = arith.constant 27 : index
    %520 = memref.load %arg2[%c27] : memref<98xf32, #tpu.memory_space<smem>>
    %c0_208 = arith.constant 0 : index
    %c54_209 = arith.constant 54 : index
    %521 = vector.load %arg5[%c0_208, %c54_209] : memref<1x358xf32, #tpu.memory_space<vmem>>, vector<1x256xf32>
    %522 = vector.broadcast %520 : f32 to vector<1x256xf32>
    %523 = arith.mulf %522, %521 : vector<1x256xf32>
    %524 = arith.addf %519, %523 : vector<1x256xf32>
    %c76 = arith.constant 76 : index
    %525 = memref.load %arg2[%c76] : memref<98xf32, #tpu.memory_space<smem>>
    %c0_210 = arith.constant 0 : index
    %c54_211 = arith.constant 54 : index
    %526 = vector.load %arg6[%c0_210, %c54_211] : memref<1x358xf32, #tpu.memory_space<vmem>>, vector<1x256xf32>
    %527 = vector.broadcast %525 : f32 to vector<1x256xf32>
    %528 = arith.mulf %527, %526 : vector<1x256xf32>
    %529 = arith.addf %524, %528 : vector<1x256xf32>
    %c34_212 = arith.constant 34 : index
    %530 = memref.load %arg2[%c34_212] : memref<98xf32, #tpu.memory_space<smem>>
    %c0_213 = arith.constant 0 : index
    %c70_214 = arith.constant 70 : index
    %531 = vector.load %arg5[%c0_213, %c70_214] : memref<1x358xf32, #tpu.memory_space<vmem>>, vector<1x256xf32>
    %532 = vector.broadcast %530 : f32 to vector<1x256xf32>
    %533 = arith.mulf %532, %531 : vector<1x256xf32>
    %534 = arith.addf %529, %533 : vector<1x256xf32>
    %c83_215 = arith.constant 83 : index
    %535 = memref.load %arg2[%c83_215] : memref<98xf32, #tpu.memory_space<smem>>
    %c0_216 = arith.constant 0 : index
    %c70_217 = arith.constant 70 : index
    %536 = vector.load %arg6[%c0_216, %c70_217] : memref<1x358xf32, #tpu.memory_space<vmem>>, vector<1x256xf32>
    %537 = vector.broadcast %535 : f32 to vector<1x256xf32>
    %538 = arith.mulf %537, %536 : vector<1x256xf32>
    %539 = arith.addf %534, %538 : vector<1x256xf32>
    %c41 = arith.constant 41 : index
    %540 = memref.load %arg2[%c41] : memref<98xf32, #tpu.memory_space<smem>>
    %c0_218 = arith.constant 0 : index
    %c86_219 = arith.constant 86 : index
    %541 = vector.load %arg5[%c0_218, %c86_219] : memref<1x358xf32, #tpu.memory_space<vmem>>, vector<1x256xf32>
    %542 = vector.broadcast %540 : f32 to vector<1x256xf32>
    %543 = arith.mulf %542, %541 : vector<1x256xf32>
    %544 = arith.addf %539, %543 : vector<1x256xf32>
    %c90 = arith.constant 90 : index
    %545 = memref.load %arg2[%c90] : memref<98xf32, #tpu.memory_space<smem>>
    %c0_220 = arith.constant 0 : index
    %c86_221 = arith.constant 86 : index
    %546 = vector.load %arg6[%c0_220, %c86_221] : memref<1x358xf32, #tpu.memory_space<vmem>>, vector<1x256xf32>
    %547 = vector.broadcast %545 : f32 to vector<1x256xf32>
    %548 = arith.mulf %547, %546 : vector<1x256xf32>
    %549 = arith.addf %544, %548 : vector<1x256xf32>
    %c48_222 = arith.constant 48 : index
    %550 = memref.load %arg2[%c48_222] : memref<98xf32, #tpu.memory_space<smem>>
    %c0_223 = arith.constant 0 : index
    %c102 = arith.constant 102 : index
    %551 = vector.load %arg5[%c0_223, %c102] : memref<1x358xf32, #tpu.memory_space<vmem>>, vector<1x256xf32>
    %552 = vector.broadcast %550 : f32 to vector<1x256xf32>
    %553 = arith.mulf %552, %551 : vector<1x256xf32>
    %554 = arith.addf %549, %553 : vector<1x256xf32>
    %c97_224 = arith.constant 97 : index
    %555 = memref.load %arg2[%c97_224] : memref<98xf32, #tpu.memory_space<smem>>
    %c0_225 = arith.constant 0 : index
    %c102_226 = arith.constant 102 : index
    %556 = vector.load %arg6[%c0_225, %c102_226] : memref<1x358xf32, #tpu.memory_space<vmem>>, vector<1x256xf32>
    %557 = vector.broadcast %555 : f32 to vector<1x256xf32>
    %558 = arith.mulf %557, %556 : vector<1x256xf32>
    %559 = arith.addf %554, %558 : vector<1x256xf32>
    %cst_227 = arith.constant 0.000000e+00 : f32
    %560 = vector.broadcast %cst_227 : f32 to vector<1x256xf32>
    %561 = arith.select %35, %559, %560 : vector<1x256xi1>, vector<1x256xf32>
    %562 = arith.addf %488, %561 : vector<1x256xf32>
    %563 = arith.negf %562 : vector<1x256xf32>
    %564 = math.exp %563 : vector<1x256xf32>
    %cst_228 = arith.constant 1.000000e+00 : f32
    %565 = vector.broadcast %cst_228 : f32 to vector<1x256xf32>
    %566 = arith.addf %565, %564 : vector<1x256xf32>
    %567 = arith.divf %565, %566 : vector<1x256xf32>
    %c0_229 = arith.constant 0 : index
    %c0_230 = arith.constant 0 : index
    %c0_231 = arith.constant 0 : index
    %568 = vector.load %arg1[%c0_229, %c0_230, %c0_231] : memref<1x4x256xf32, #tpu.memory_space<vmem>>, vector<1x4x256xf32>
    %569 = vector.shape_cast %568 : vector<1x4x256xf32> to vector<4x256xf32>
    %570 = vector.broadcast %567 : vector<1x256xf32> to vector<4x256xf32>
    %571 = arith.mulf %569, %570 : vector<4x256xf32>
    %c0_232 = arith.constant 0 : index
    %c0_233 = arith.constant 0 : index
    %c0_234 = arith.constant 0 : index
    %572 = vector.load %arg4[%c0_232, %c0_233, %c0_234] : memref<1x4x256xf32, #tpu.memory_space<vmem>>, vector<1x4x256xf32>
    %573 = vector.shape_cast %572 : vector<1x4x256xf32> to vector<4x256xf32>
    %574 = vector.shape_cast %571 : vector<4x256xf32> to vector<1x4x256xf32>
    tpu.vector_store %arg4[%c0_232, %c0_233, %c0_234], %574 {strides = array<i32>} : memref<1x4x256xf32, #tpu.memory_space<vmem>>, vector<1x4x256xf32>,
    return
  }
  func.func @transform_0(%arg0: i32) -> (i32, i32, i32) {
    %c0_i32 = arith.constant 0 : i32
    %c0_i32_0 = arith.constant 0 : i32
    %c0_i32_1 = arith.constant 0 : i32
    return %arg0, %c0_i32, %c0_i32_0 : i32, i32, i32
  }
  func.func @transform_1(%arg0: i32) -> i32 {
    %c0_i32 = arith.constant 0 : i32
    %c0_i32_0 = arith.constant 0 : i32
    return %c0_i32 : i32
  }
  func.func @transform_2(%arg0: i32) -> (i32, i32) {
    %c0_i32 = arith.constant 0 : i32
    %c0_i32_0 = arith.constant 0 : i32
    %c0_i32_1 = arith.constant 0 : i32
    return %c0_i32, %c0_i32_0 : i32, i32
  }
  func.func @transform_3(%arg0: i32) -> (i32, i32, i32) {
    %c0_i32 = arith.constant 0 : i32
    %c0_i32_0 = arith.constant 0 : i32
    %c0_i32_1 = arith.constant 0 : i32
    return %arg0, %c0_i32, %c0_i32_0 : i32, i32, i32
  }
}

</mosaic_0001>

<llo_original>
// kernel: tile.9
$region0: #{tile.9}
  %s0 = inlined_call_operand.vmem [shape: s32[16,16], index: 0, kind: input, shape index: {}]
  %s1 = inlined_call_operand.vmem [shape: s32[1,256], index: 1, kind: output, shape index: {}]
  $region1: #{tile.9} parent=0
    #allocation0 [shape = 'u8[8192]{0}', space=vmem, size = 0x2000, scoped, tag = 'scoped mem for output reshape']
    %s2 = smov 3
    %v3 = vld [vmem:[%s0] ss:$8 sm:%s2]
    %vm4 = vcmask 130048
    %5 = vst.msk [vmem:[#allocation0] ss:$8 sm:$0x3] %vm4, %v3
    %s6 = scalar_lea.vmem %s0, 7
    %s7 = smov 3
    %v8 = vld [vmem:[%s6] ss:$8 sm:%s7]
    %9 = vrot.lane.b32.xlu0 %v8, 112
    %v10 = vpop.permute.xlu0 %9
    %vm11 = vcmask 1048448
    %12 = vst.msk [vmem:[#allocation0] ss:$8 sm:$0x3] %vm11, %v10
    %s13 = scalar_lea.vmem %s0, 6
    %s14 = smov 3
    %v15 = vld [vmem:[%s13] ss:$8 sm:%s14]
    %16 = vrot.lane.b32.xlu0 %v15, 96
    %v17 = vpop.permute.xlu0 %16
    %vm18 = vcmask 917248
    %19 = vst.msk [vmem:[#allocation0] ss:$8 sm:$0x3] %vm18, %v17
    %s20 = scalar_lea.vmem %s0, 5
    %s21 = smov 3
    %v22 = vld [vmem:[%s20] ss:$8 sm:%s21]
    %23 = vrot.lane.b32.xlu0 %v22, 80
    %v24 = vpop.permute.xlu0 %23
    %vm25 = vcmask 786048
    %26 = vst.msk [vmem:[#allocation0] ss:$8 sm:$0x3] %vm25, %v24
    %s27 = scalar_lea.vmem %s0, 4
    %s28 = smov 3
    %v29 = vld [vmem:[%s27] ss:$8 sm:%s28]
    %30 = vrot.lane.b32.xlu0 %v29, 64
    %v31 = vpop.permute.xlu0 %30
    %vm32 = vcmask 654848
    %33 = vst.msk [vmem:[#allocation0] ss:$8 sm:$0x3] %vm32, %v31
    %s34 = scalar_lea.vmem %s0, 3
    %s35 = smov 3
    %v36 = vld [vmem:[%s34] ss:$8 sm:%s35]
    %37 = vrot.lane.b32.xlu0 %v36, 48
    %v38 = vpop.permute.xlu0 %37
    %vm39 = vcmask 523648
    %40 = vst.msk [vmem:[#allocation0] ss:$8 sm:$0x3] %vm39, %v38
    %s41 = scalar_lea.vmem %s0, 2
    %s42 = smov 3
    %v43 = vld [vmem:[%s41] ss:$8 sm:%s42]
    %44 = vrot.lane.b32.xlu0 %v43, 32
    %v45 = vpop.permute.xlu0 %44
    %vm46 = vcmask 392448
    %47 = vst.msk [vmem:[#allocation0] ss:$8 sm:$0x3] %vm46, %v45
    %s48 = scalar_lea.vmem %s0, 1
    %s49 = smov 3
    %v50 = vld [vmem:[%s48] ss:$8 sm:%s49]
    %51 = vrot.lane.b32.xlu0 %v50, 16
    %v52 = vpop.permute.xlu0 %51
    %vm53 = vcmask 261248
    %54 = vst.msk [vmem:[#allocation0] ss:$8 sm:$0x3] %vm53, %v52
    %s56 = sshllo.u32 0, 1
    %v58 = vld [vmem:[#allocation0] sm:%s56]
    %s59 = sshllo.u32 0, 1
    %60 = vst [vmem:[%s1] sm:%s59] %v58
    %s61 = scalar_lea.vmem [#allocation0], 8
    %v62 = vld [vmem:[%s61] sm:%s56]
    %s63 = sshllo.u32 0, 1
    %s64 = scalar_lea.vmem %s1, 1
    %65 = vst [vmem:[%s64] sm:%s63] %v62

// kernel: spatial_attention_forward.1
$region0: #{spatial_attention_forward.1}
  #allocation0 [shape = 'u32[]', space=smem, size = 0x4, offset = 0x4, fixed_abs, tag = 'smem constant byte address 0x4 - core index']
  #allocation1 [shape = 'u32[144,128]{1,0:T(1,128)}', space=vmem, size = 0x12000, scoped, tag = 'internal scratch']
  #allocation2 [shape = 'f32[1,358]{1,0:T(1,128)}', space=vmem, size = 0x600, scoped, tag = 'scratch operand']
  #allocation3 [shape = 'f32[1,358]{1,0:T(1,128)}', space=vmem, size = 0x600, scoped, tag = 'scratch operand']
  %s0 = inlined_call_operand.vmem [shape: f32[2,4,256], index: 0, kind: input, shape index: {}]
  %s1 = inlined_call_operand.vmem [shape: f32[98], index: 1, kind: input, shape index: {}]
  %s2 = inlined_call_operand.vmem [shape: s32[1,256], index: 2, kind: input, shape index: {}]
  %s3 = inlined_call_operand.vmem [shape: f32[2,4,256], index: 3, kind: output, shape index: {}]
  %s4 = sld [smem:[#allocation0]]
  $region49: #{spatial_attention_forward.1} parent=0
    _
  %s6 = ssub.s32 1, %s4
  %s7 = scalar_select 0, %s6, %s4
  $region1: #{spatial_attention_forward.1} parent=0
    #allocation4 [shape = 'u8[512]{0}', space=smem, size = 0x200, scoped, tag = 'input window, operand 1, single buffered']
    #allocation5 [shape = 's32[2]{0}', space=sflag, size = 0x8, scoped, tag = 'scoped memory for spatial_attention_forward.1']
    %8 = vsyncpa [#allocation5], 0
    loop: start=0, step=1, limit=4
    $region2: #{spatial_attention_forward.1} parent=1 // loop_pre_header
      _
    $region3: #{spatial_attention_forward.1} parent=1 // loop_header
      %s10 = sphi 0, %s14
      %p11 = scmp.ge.s32.totalorder %s10, 4
      %s20 = sphi 0, %s22
      %s23 = sphi 0, %s20
      %s24 = sphi 0, %s23
      %s40 = sphi 0, %s24
      %s44 = sphi 0, %s44
      %s46 = sphi 0, %s44
      %s47 = sphi 0, %s46
      %s61 = sphi 0, %s47
      %s65 = sphi 0, %s65
      %s67 = sphi 0, %s65
      %s68 = sphi 0, %s67
      %s82 = sphi 0, %s68
      %s88 = sphi 0, %s90
      %s91 = sphi 0, %s88
      %s92 = sphi 0, %s91
      %s108 = sphi 0, %s92
    $region4: #{spatial_attention_forward.1} parent=1 // loop_header_branch
      %13 = sbr.rel (%p11) target = $region8
    $region5: #{spatial_attention_forward.1} parent=1 // loop_body
      %s15 = ssub.s32 %s10, 1
      %s16 = ssub.s32 %s10, 2
      %s17 = sadd.s32 %s10, 1
      %s18 = ssub.s32 %s10, %s17
      %p19 = scmp.eq.s32.totalorder %s18, 0
      %s21 = sadd.s32 %s20, 1
      %s22 = scalar_select %p19, %s20, %s21
      %p25 = pneg %p19
      %p26 = scmp.eq.s32.totalorder %s10, 1
      %p27 = por %p25, %p26
      %p28 = scmp.ne.s32.totalorder %s20, %s23
      %p29 = scmp.eq.s32.totalorder %s10, 0
      %p30 = por %p28, %p29
      %p31 = scmp.ne.s32.totalorder %s20, %s23
      %p32 = scmp.eq.s32.totalorder %s15, 1
      %p33 = por %p31, %p32
      %p34 = scmp.ne.s32.totalorder %s23, %s24
      %p35 = scmp.eq.s32.totalorder %s15, 0
      %p36 = por %p34, %p35
      %p37 = scmp.ne.s32.totalorder %s23, %s24
      %p38 = scmp.eq.s32.totalorder %s16, 1
      %p39 = por %p37, %p38
      %p41 = scmp.ne.s32.totalorder %s24, %s40
      %p42 = scmp.eq.s32.totalorder %s16, 0
      %p43 = por %p41, %p42
      %s45 = sadd.s32 %s44, 1
      %p48 = scmp.eq.s32.totalorder %s10, 1
      %p49 = scmp.ne.s32.totalorder %s44, %s46
      %p50 = scmp.eq.s32.totalorder %s10, 0
      %p51 = por %p49, %p50
      %p52 = scmp.ne.s32.totalorder %s44, %s46
      %p53 = scmp.eq.s32.totalorder %s15, 1
      %p54 = por %p52, %p53
      %p55 = scmp.ne.s32.totalorder %s46, %s47
      %p56 = scmp.eq.s32.totalorder %s15, 0
      %p57 = por %p55, %p56
      %p58 = scmp.ne.s32.totalorder %s46, %s47
      %p59 = scmp.eq.s32.totalorder %s16, 1
      %p60 = por %p58, %p59
      %p62 = scmp.ne.s32.totalorder %s47, %s61
      %p63 = scmp.eq.s32.totalorder %s16, 0
      %p64 = por %p62, %p63
      %s66 = sadd.s32 %s65, 1
      %p69 = scmp.eq.s32.totalorder %s10, 1
      %p70 = scmp.ne.s32.totalorder %s65, %s67
      %p71 = scmp.eq.s32.totalorder %s10, 0
      %p72 = por %p70, %p71
      %p73 = scmp.ne.s32.totalorder %s65, %s67
      %p74 = scmp.eq.s32.totalorder %s15, 1
      %p75 = por %p73, %p74
      %p76 = scmp.ne.s32.totalorder %s67, %s68
      %p77 = scmp.eq.s32.totalorder %s15, 0
      %p78 = por %p76, %p77
      %p79 = scmp.ne.s32.totalorder %s67, %s68
      %p80 = scmp.eq.s32.totalorder %s16, 1
      %p81 = por %p79, %p80
      %p83 = scmp.ne.s32.totalorder %s68, %s82
      %p84 = scmp.eq.s32.totalorder %s16, 0
      %p85 = por %p83, %p84
      %s86 = ssub.s32 %s10, %s17
      %p87 = scmp.eq.s32.totalorder %s86, 0
      %s89 = sadd.s32 %s88, 1
      %s90 = scalar_select %p87, %s88, %s89
      %p93 = pneg %p87
      %p94 = scmp.eq.s32.totalorder %s10, 1
      %p95 = por %p93, %p94
      %p96 = scmp.ne.s32.totalorder %s88, %s91
      %p97 = scmp.eq.s32.totalorder %s10, 0
      %p98 = por %p96, %p97
      %p99 = scmp.ne.s32.totalorder %s88, %s91
      %p100 = scmp.eq.s32.totalorder %s15, 1
      %p101 = por %p99, %p100
      %p102 = scmp.ne.s32.totalorder %s91, %s92
      %p103 = scmp.eq.s32.totalorder %s15, 0
      %p104 = por %p102, %p103
      %p105 = scmp.ne.s32.totalorder %s91, %s92
      %p106 = scmp.eq.s32.totalorder %s16, 1
      %p107 = por %p105, %p106
      %p109 = scmp.ne.s32.totalorder %s92, %s108
      %p110 = scmp.eq.s32.totalorder %s16, 0
      %p111 = por %p109, %p110
      %p112 = scmp.le.s32.totalorder 1, %s10
      %p113 = scmp.lt.s32.totalorder %s10, 3
      %p114 = pnand %p112, %p113
      %p115 = pneg %p114
      // Predicated region
      $region9: #{spatial_attention_forward.1} parent=5 // pred_check
        _
      $region10: #{spatial_attention_forward.1} parent=5 // pred_check_branch
        %117 = sbr.rel (%p114) target = $region12
      $region11: #{spatial_attention_forward.1} parent=5 // pred_region
        %s118 = ssub.s32 %s10, 1
        // Predicated region
        $region13: #{spatial_attention_forward.1} parent=11 // pred_check
          %p119 = pneg %p57
        $region14: #{spatial_attention_forward.1} parent=11 // pred_check_branch
          %121 = sbr.rel (%p119) target = $region16
        $region15: #{spatial_attention_forward.1} parent=11 // pred_region
          %s123 = ssub.s32 16, 16
          %124 = vsyncadd [#allocation5], %s123
          %s126 = sshll.u32 %s1, 4
          %s127 = int_to_ptr.vmem [resolvable:$true] %s126
          %129 = dma.vmem_to_smem %s127, 16, [#allocation4], [#allocation5]
        $region16: #{spatial_attention_forward.1} parent=11 // pred_fallthru
          _
        // Predicated region
        $region17: #{spatial_attention_forward.1} parent=11 // pred_check
          %p130 = pneg %p78
        $region18: #{spatial_attention_forward.1} parent=11 // pred_check_branch
          %132 = sbr.rel (%p130) target = $region20
        $region19: #{spatial_attention_forward.1} parent=11 // pred_region
          _
        $region20: #{spatial_attention_forward.1} parent=11 // pred_fallthru
          _
      $region12: #{spatial_attention_forward.1} parent=5 // pred_fallthru
        _
      %p133 = scmp.lt.s32.totalorder %s10, 2
      // Predicated region
      $region21: #{spatial_attention_forward.1} parent=5 // pred_check
        %p134 = pneg %p133
      $region22: #{spatial_attention_forward.1} parent=5 // pred_check_branch
        %136 = sbr.rel (%p134) target = $region24
      $region23: #{spatial_attention_forward.1} parent=5 // pred_region
        // Predicated region
        $region25: #{spatial_attention_forward.1} parent=23 // pred_check
          %p137 = pneg %p30
        $region26: #{spatial_attention_forward.1} parent=23 // pred_check_branch
          %139 = sbr.rel (%p137) target = $region28
        $region27: #{spatial_attention_forward.1} parent=23 // pred_region
          %p140 = scmp.lt.s32.totalorder %s10, 1
          %s141 = scalar_select %p140, %s10, 1
          %s142 = smul.addr %s141, 2
          %s143 = smul.addr %s142, 4
          %s144 = scalar_lea.vmem %s0, %s143
        $region28: #{spatial_attention_forward.1} parent=23 // pred_fallthru
          _
      $region24: #{spatial_attention_forward.1} parent=5 // pred_fallthru
        _
      %p145 = scmp.le.s32.totalorder 1, %s10
      %p146 = scmp.lt.s32.totalorder %s10, 3
      %p147 = pnand %p145, %p146
      %p148 = pneg %p147
      // Predicated region
      $region29: #{spatial_attention_forward.1} parent=5 // pred_check
        _
      $region30: #{spatial_attention_forward.1} parent=5 // pred_check_branch
        %150 = sbr.rel (%p147) target = $region32
      $region31: #{spatial_attention_forward.1} parent=5 // pred_region
        %s151 = ssub.s32 %s10, 1
        // Predicated region
        $region33: #{spatial_attention_forward.1} parent=31 // pred_check
          %p152 = pneg %p57
        $region34: #{spatial_attention_forward.1} parent=31 // pred_check_branch
          %154 = sbr.rel (%p152) target = $region36
        $region35: #{spatial_attention_forward.1} parent=31 // pred_region
          %155 = dma.done [#allocation5], 16
        $region36: #{spatial_attention_forward.1} parent=31 // pred_fallthru
          _
        %156 = sfence
        %p157 = scmp.lt.s32.totalorder %s15, 1
        %s158 = scalar_select %p157, %s15, 1
        %s159 = smul.addr %s158, 2
        %s160 = smul.addr %s159, 4
        %s161 = scalar_lea.vmem %s0, %s160
        %p162 = pneg %p36
        %p163 = pneg %p33
        %p164 = pneg %p57
        %p165 = pneg %p54
        %p166 = pneg %p78
        %p167 = pneg %p75
        %p168 = pneg %p104
        %p169 = pneg %p101
        %p170 = scmp.lt.s32.totalorder %s15, 1
        %s171 = scalar_select %p170, %s15, 1
        %s172 = smul.addr %s171, 2
        %s173 = smul.addr %s172, 4
        %s174 = scalar_lea.vmem %s3, %s173
        %p175 = scmp.lt.s32.totalorder %s15, 1
        %s176 = scalar_select %p175, %s15, 1
        %s177 = smul.addr %s176, 2
        %s178 = smul.addr %s177, 4
        %s179 = scalar_lea.vmem %s0, %s178
        %p180 = scmp.lt.s32.totalorder %s15, 1
        %s181 = scalar_select %p180, %s15, 1
        %s182 = smul.addr %s181, 2
        %s183 = smul.addr %s182, 4
        %s184 = scalar_lea.vmem %s3, %s183
        %v185 = vlaneseq
        %vm186 = vcmp.ge.s32.totalorder %v185, 0
        %vm187 = vcmp.lt.s32.totalorder %v185, 51
        %vm188 = vmand %vm186, %vm187
        %189 = vst.msk [vmem:[#allocation2] sm:$0x1] %vm188, 0.0
        %vm190 = vcmp.ge.s32.totalorder %v185, 51
        %vm191 = vcmp.lt.s32.totalorder %v185, 102
        %vm192 = vmand %vm190, %vm191
        %193 = vst.msk [vmem:[#allocation2 + $0x2] sm:$0x1] %vm192, 0.0
        %194 = vst.msk [vmem:[#allocation3] sm:$0x1] %vm188, 0.0
        %195 = vst.msk [vmem:[#allocation3 + $0x2] sm:$0x1] %vm192, 0.0
        %v196 = vld [vmem:[%s2] sm:$0x3]
        %vm197 = vcmp.ge.s32.totalorder %v196, 3
        %vm198 = vcmp.lt.s32.totalorder %v196, 16
        %vm199 = vmand %vm197, %vm198
        %vm200 = vcmp.ge.s32.totalorder %v196, 2
        %vm201 = vmand %vm200, %vm198
        %vm202 = vcmp.ge.s32.totalorder %v196, 1
        %vm203 = vmand %vm202, %vm198
        %vm204 = vcmp.ge.s32.totalorder %v196, 0
        %vm205 = vcmp.lt.s32.totalorder %v196, 15
        %vm206 = vmand %vm204, %vm205
        %vm207 = vcmp.lt.s32.totalorder %v196, 14
        %vm208 = vmand %vm204, %vm207
        %vm209 = vcmp.lt.s32.totalorder %v196, 13
        %vm210 = vmand %vm204, %vm209
        %v211 = vld [vmem:[%s179] sm:$0xff]
        %v213 = vcombine.high %v211, %v211
        %vm215 = vcmask 1043456
        %v216 = vsel %vm215, %v211, 0.0
        %v217 = vrot.slane %v216, 4
        %v218 = vadd.f32 %v216, %v217
        %v219 = vrot.slane %v218, 2
        %v220 = vadd.f32 %v218, %v219
        %v221 = vrot.slane %v220, 1
        %v222 = vadd.f32 %v220, %v221
        %v223 = vsel %vm215, %v213, 0.0
        %v224 = vrot.slane %v223, 4
        %v225 = vadd.f32 %v223, %v224
        %v226 = vrot.slane %v225, 2
        %v227 = vadd.f32 %v225, %v226
        %v228 = vrot.slane %v227, 1
        %v229 = vadd.f32 %v227, %v228
        %v230 = vrcp.pop 4.0
        %v231 = vmul.f32 %v222, %v230
        %v232 = vmul.f32 %v229, %v230
        %v235 = vcombine.low %v231, %v232
        %v237 = vunpack.c.l.s4 1966171168
        %v238 = vunpack.c.0.s8 %v237
        %v239 = vlaneseq
        %v240 = vshrl.u32 %v239, 7
        %v241 = vsub.s32 %v238, %v240
        %v242 = vrot.slane %v235, %v241
        %v244 = vunpack.c.l.s4 1966171168
        %v245 = vunpack.c.0.s8 %v244
        %v246 = vlaneseq
        %v247 = vshrl.u32 %v246, 7
        %v248 = vsub.s32 %v245, %v247
        %v249 = vrot.slane %v242, %v248
        %250 = vrot.lane.b32.xlu0 %v249, 51
        %v251 = vpop.permute.xlu0 %250
        %v252 = vrot.slane %v251, 7
        %vm253 = vcmask 416768
        %v254 = vsel %vm253, %v252, %v251
        %vm256 = vcmp.lt.s32.totalorder %v185, 307
        %vm257 = vmand %vm190, %vm256
        %258 = vst.msk [vmem:[#allocation2] sm:$0x7] %vm257, %v254
        %v259 = vsel %vm215, %v211, -inf
        %v260 = vrot.slane %v259, 4
        %v261 = vmax.f32 %v259, %v260
        %v262 = vrot.slane %v261, 2
        %v263 = vmax.f32 %v261, %v262
        %v264 = vrot.slane %v263, 1
        %v265 = vmax.f32 %v263, %v264
        %v266 = vsel %vm215, %v213, -inf
        %v267 = vrot.slane %v266, 4
        %v268 = vmax.f32 %v266, %v267
        %v269 = vrot.slane %v268, 2
        %v270 = vmax.f32 %v268, %v269
        %v271 = vrot.slane %v270, 1
        %v272 = vmax.f32 %v270, %v271
        %v275 = vcombine.low %v265, %v272
        %v277 = vunpack.c.l.s4 1966171168
        %v278 = vunpack.c.0.s8 %v277
        %v279 = vlaneseq
        %v280 = vshrl.u32 %v279, 7
        %v281 = vsub.s32 %v278, %v280
        %v282 = vrot.slane %v275, %v281
        %v284 = vunpack.c.l.s4 1966171168
        %v285 = vunpack.c.0.s8 %v284
        %v286 = vlaneseq
        %v287 = vshrl.u32 %v286, 7
        %v288 = vsub.s32 %v285, %v287
        %v289 = vrot.slane %v282, %v288
        %290 = vrot.lane.b32.xlu0 %v289, 51
        %v291 = vpop.permute.xlu0 %290
        %v292 = vrot.slane %v291, 7
        %v293 = vsel %vm253, %v292, %v291
        %295 = vst.msk [vmem:[#allocation3] sm:$0x7] %vm257, %v293
        %s296 = sld [smem:[#allocation4]]
        %v297 = vld [vmem:[#allocation2] sm:$0x3]
        %v298 = vstv %s296
        %v299 = vmul.f32 %v298, %v297
        %v300 = vadd.f32 %v299, 0.0
        %s301 = sld [smem:[#allocation4 + $0x31]]
        %v302 = vld [vmem:[#allocation3] sm:$0x3]
        %v303 = vstv %s301
        %v304 = vmul.f32 %v303, %v302
        %v305 = vadd.f32 %v300, %v304
        %s306 = sld [smem:[#allocation4 + $0x7]]
        %v307 = vld [vmem:[#allocation2] sm:$0x7]
        %v308 = vstv %s306
        %v309 = vmul.f32 %v308, %v307
        %311 = vrot.lane.b32.xlu0 %v309, 112
        %v312 = vpop.permute.xlu0 %311
        %v313 = vrot.slane %v312, 1
        %vm314 = vcmask 916480
        %v315 = vsel %vm314, %v312, %v313
        %v317 = vadd.f32 %v305, %v315
        %s318 = sld [smem:[#allocation4 + $0x38]]
        %v319 = vld [vmem:[#allocation3] sm:$0x7]
        %v320 = vstv %s318
        %v321 = vmul.f32 %v320, %v319
        %323 = vrot.lane.b32.xlu0 %v321, 112
        %v324 = vpop.permute.xlu0 %323
        %v325 = vrot.slane %v324, 1
        %v326 = vsel %vm314, %v324, %v325
        %v328 = vadd.f32 %v317, %v326
        %s329 = sld [smem:[#allocation4 + $0xe]]
        %v330 = vstv %s329
        %v331 = vmul.f32 %v330, %v307
        %333 = vrot.lane.b32.xlu0 %v331, 96
        %v334 = vpop.permute.xlu0 %333
        %v335 = vrot.slane %v334, 1
        %vm336 = vcmask 785408
        %v337 = vsel %vm336, %v334, %v335
        %v339 = vadd.f32 %v328, %v337
        %s340 = sld [smem:[#allocation4 + $0x3f]]
        %v341 = vstv %s340
        %v342 = vmul.f32 %v341, %v319
        %344 = vrot.lane.b32.xlu0 %v342, 96
        %v345 = vpop.permute.xlu0 %344
        %v346 = vrot.slane %v345, 1
        %v347 = vsel %vm336, %v345, %v346
        %v349 = vadd.f32 %v339, %v347
        %s350 = sld [smem:[#allocation4 + $0x15]]
        %v351 = vstv %s350
        %v352 = vmul.f32 %v351, %v307
        %354 = vrot.lane.b32.xlu0 %v352, 80
        %v355 = vpop.permute.xlu0 %354
        %v356 = vrot.slane %v355, 1
        %vm357 = vcmask 654336
        %v358 = vsel %vm357, %v355, %v356
        %v360 = vadd.f32 %v349, %v358
        %s361 = sld [smem:[#allocation4 + $0x46]]
        %v362 = vstv %s361
        %v363 = vmul.f32 %v362, %v319
        %365 = vrot.lane.b32.xlu0 %v363, 80
        %v366 = vpop.permute.xlu0 %365
        %v367 = vrot.slane %v366, 1
        %v368 = vsel %vm357, %v366, %v367
        %v370 = vadd.f32 %v360, %v368
        %s371 = sld [smem:[#allocation4 + $0x1c]]
        %v372 = vstv %s371
        %v373 = vmul.f32 %v372, %v307
        %375 = vrot.lane.b32.xlu0 %v373, 64
        %v376 = vpop.permute.xlu0 %375
        %v377 = vrot.slane %v376, 1
        %vm378 = vcmask 523264
        %v379 = vsel %vm378, %v376, %v377
        %v381 = vadd.f32 %v370, %v379
        %s382 = sld [smem:[#allocation4 + $0x4d]]
        %v383 = vstv %s382
        %v384 = vmul.f32 %v383, %v319
        %386 = vrot.lane.b32.xlu0 %v384, 64
        %v387 = vpop.permute.xlu0 %386
        %v388 = vrot.slane %v387, 1
        %v389 = vsel %vm378, %v387, %v388
        %v391 = vadd.f32 %v381, %v389
        %s392 = sld [smem:[#allocation4 + $0x23]]
        %v393 = vstv %s392
        %v394 = vmul.f32 %v393, %v307
        %396 = vrot.lane.b32.xlu0 %v394, 48
        %v397 = vpop.permute.xlu0 %396
        %v398 = vrot.slane %v397, 1
        %vm399 = vcmask 392192
        %v400 = vsel %vm399, %v397, %v398
        %v402 = vadd.f32 %v391, %v400
        %s403 = sld [smem:[#allocation4 + $0x54]]
        %v404 = vstv %s403
        %v405 = vmul.f32 %v404, %v319
        %407 = vrot.lane.b32.xlu0 %v405, 48
        %v408 = vpop.permute.xlu0 %407
        %v409 = vrot.slane %v408, 1
        %v410 = vsel %vm399, %v408, %v409
        %v412 = vadd.f32 %v402, %v410
        %s413 = sld [smem:[#allocation4 + $0x2a]]
        %v414 = vstv %s413
        %v415 = vmul.f32 %v414, %v307
        %417 = vrot.lane.b32.xlu0 %v415, 32
        %v418 = vpop.permute.xlu0 %417
        %v419 = vrot.slane %v418, 1
        %vm420 = vcmask 261120
        %v421 = vsel %vm420, %v418, %v419
        %v423 = vadd.f32 %v412, %v421
        %s424 = sld [smem:[#allocation4 + $0x5b]]
        %v425 = vstv %s424
        %v426 = vmul.f32 %v425, %v319
        %428 = vrot.lane.b32.xlu0 %v426, 32
        %v429 = vpop.permute.xlu0 %428
        %v430 = vrot.slane %v429, 1
        %v431 = vsel %vm420, %v429, %v430
        %v433 = vadd.f32 %v423, %v431
        %v434 = vsel %vm199, %v433, 0.0
        %v435 = vadd.f32 %v434, 0.0
        %s436 = sld [smem:[#allocation4 + $0x1]]
        %v437 = vstv %s436
        %v438 = vmul.f32 %v437, %v307
        %v439 = vadd.f32 %v438, 0.0
        %s440 = sld [smem:[#allocation4 + $0x32]]
        %v441 = vstv %s440
        %v442 = vmul.f32 %v441, %v319
        %v443 = vadd.f32 %v439, %v442
        %s444 = sld [smem:[#allocation4 + $0x8]]
        %v445 = vstv %s444
        %v446 = vmul.f32 %v445, %v307
        %448 = vrot.lane.b32.xlu0 %v446, 112
        %v449 = vpop.permute.xlu0 %448
        %v450 = vrot.slane %v449, 1
        %v451 = vsel %vm314, %v449, %v450
        %v453 = vadd.f32 %v443, %v451
        %s454 = sld [smem:[#allocation4 + $0x39]]
        %v455 = vstv %s454
        %v456 = vmul.f32 %v455, %v319
        %458 = vrot.lane.b32.xlu0 %v456, 112
        %v459 = vpop.permute.xlu0 %458
        %v460 = vrot.slane %v459, 1
        %v461 = vsel %vm314, %v459, %v460
        %v463 = vadd.f32 %v453, %v461
        %s464 = sld [smem:[#allocation4 + $0xf]]
        %v465 = vstv %s464
        %v466 = vmul.f32 %v465, %v307
        %468 = vrot.lane.b32.xlu0 %v466, 96
        %v469 = vpop.permute.xlu0 %468
        %v470 = vrot.slane %v469, 1
        %v471 = vsel %vm336, %v469, %v470
        %v473 = vadd.f32 %v463, %v471
        %s474 = sld [smem:[#allocation4 + $0x40]]
        %v475 = vstv %s474
        %v476 = vmul.f32 %v475, %v319
        %478 = vrot.lane.b32.xlu0 %v476, 96
        %v479 = vpop.permute.xlu0 %478
        %v480 = vrot.slane %v479, 1
        %v481 = vsel %vm336, %v479, %v480
        %v483 = vadd.f32 %v473, %v481
        %s484 = sld [smem:[#allocation4 + $0x16]]
        %v485 = vstv %s484
        %v486 = vmul.f32 %v485, %v307
        %488 = vrot.lane.b32.xlu0 %v486, 80
        %v489 = vpop.permute.xlu0 %488
        %v490 = vrot.slane %v489, 1
        %v491 = vsel %vm357, %v489, %v490
        %v493 = vadd.f32 %v483, %v491
        %s494 = sld [smem:[#allocation4 + $0x47]]
        %v495 = vstv %s494
        %v496 = vmul.f32 %v495, %v319
        %498 = vrot.lane.b32.xlu0 %v496, 80
        %v499 = vpop.permute.xlu0 %498
        %v500 = vrot.slane %v499, 1
        %v501 = vsel %vm357, %v499, %v500
        %v503 = vadd.f32 %v493, %v501
        %s504 = sld [smem:[#allocation4 + $0x1d]]
        %v505 = vstv %s504
        %v506 = vmul.f32 %v505, %v307
        %508 = vrot.lane.b32.xlu0 %v506, 64
        %v509 = vpop.permute.xlu0 %508
        %v510 = vrot.slane %v509, 1
        %v511 = vsel %vm378, %v509, %v510
        %v513 = vadd.f32 %v503, %v511
        %s514 = sld [smem:[#allocation4 + $0x4e]]
        %v515 = vstv %s514
        %v516 = vmul.f32 %v515, %v319
        %518 = vrot.lane.b32.xlu0 %v516, 64
        %v519 = vpop.permute.xlu0 %518
        %v520 = vrot.slane %v519, 1
        %v521 = vsel %vm378, %v519, %v520
        %v523 = vadd.f32 %v513, %v521
        %s524 = sld [smem:[#allocation4 + $0x24]]
        %v525 = vstv %s524
        %v526 = vmul.f32 %v525, %v307
        %528 = vrot.lane.b32.xlu0 %v526, 48
        %v529 = vpop.permute.xlu0 %528
        %v530 = vrot.slane %v529, 1
        %v531 = vsel %vm399, %v529, %v530
        %v533 = vadd.f32 %v523, %v531
        %s534 = sld [smem:[#allocation4 + $0x55]]
        %v535 = vstv %s534
        %v536 = vmul.f32 %v535, %v319
        %538 = vrot.lane.b32.xlu0 %v536, 48
        %v539 = vpop.permute.xlu0 %538
        %v540 = vrot.slane %v539, 1
        %v541 = vsel %vm399, %v539, %v540
        %v543 = vadd.f32 %v533, %v541
        %s544 = sld [smem:[#allocation4 + $0x2b]]
        %v545 = vstv %s544
        %v546 = vmul.f32 %v545, %v307
        %548 = vrot.lane.b32.xlu0 %v546, 32
        %v549 = vpop.permute.xlu0 %548
        %v550 = vrot.slane %v549, 1
        %v551 = vsel %vm420, %v549, %v550
        %v553 = vadd.f32 %v543, %v551
        %s554 = sld [smem:[#allocation4 + $0x5c]]
        %v555 = vstv %s554
        %v556 = vmul.f32 %v555, %v319
        %558 = vrot.lane.b32.xlu0 %v556, 32
        %v559 = vpop.permute.xlu0 %558
        %v560 = vrot.slane %v559, 1
        %v561 = vsel %vm420, %v559, %v560
        %v563 = vadd.f32 %v553, %v561
        %565 = vrot.lane.b32.xlu0 %v563, 127
        %v566 = vpop.permute.xlu0 %565
        %v567 = vrot.slane %v566, 1
        %vm568 = vcmask 1039360
        %v569 = vsel %vm568, %v566, %v567
        %v571 = vsel %vm201, %v569, 0.0
        %v572 = vadd.f32 %v435, %v571
        %s573 = sld [smem:[#allocation4 + $0x2]]
        %v574 = vstv %s573
        %v575 = vmul.f32 %v574, %v307
        %v576 = vadd.f32 %v575, 0.0
        %s577 = sld [smem:[#allocation4 + $0x33]]
        %v578 = vstv %s577
        %v579 = vmul.f32 %v578, %v319
        %v580 = vadd.f32 %v576, %v579
        %s581 = sld [smem:[#allocation4 + $0x9]]
        %v582 = vstv %s581
        %v583 = vmul.f32 %v582, %v307
        %585 = vrot.lane.b32.xlu0 %v583, 112
        %v586 = vpop.permute.xlu0 %585
        %v587 = vrot.slane %v586, 1
        %v588 = vsel %vm314, %v586, %v587
        %v590 = vadd.f32 %v580, %v588
        %s591 = sld [smem:[#allocation4 + $0x3a]]
        %v592 = vstv %s591
        %v593 = vmul.f32 %v592, %v319
        %595 = vrot.lane.b32.xlu0 %v593, 112
        %v596 = vpop.permute.xlu0 %595
        %v597 = vrot.slane %v596, 1
        %v598 = vsel %vm314, %v596, %v597
        %v600 = vadd.f32 %v590, %v598
        %s601 = sld [smem:[#allocation4 + $0x10]]
        %v602 = vstv %s601
        %v603 = vmul.f32 %v602, %v307
        %605 = vrot.lane.b32.xlu0 %v603, 96
        %v606 = vpop.permute.xlu0 %605
        %v607 = vrot.slane %v606, 1
        %v608 = vsel %vm336, %v606, %v607
        %v610 = vadd.f32 %v600, %v608
        %s611 = sld [smem:[#allocation4 + $0x41]]
        %v612 = vstv %s611
        %v613 = vmul.f32 %v612, %v319
        %615 = vrot.lane.b32.xlu0 %v613, 96
        %v616 = vpop.permute.xlu0 %615
        %v617 = vrot.slane %v616, 1
        %v618 = vsel %vm336, %v616, %v617
        %v620 = vadd.f32 %v610, %v618
        %s621 = sld [smem:[#allocation4 + $0x17]]
        %v622 = vstv %s621
        %v623 = vmul.f32 %v622, %v307
        %625 = vrot.lane.b32.xlu0 %v623, 80
        %v626 = vpop.permute.xlu0 %625
        %v627 = vrot.slane %v626, 1
        %v628 = vsel %vm357, %v626, %v627
        %v630 = vadd.f32 %v620, %v628
        %s631 = sld [smem:[#allocation4 + $0x48]]
        %v632 = vstv %s631
        %v633 = vmul.f32 %v632, %v319
        %635 = vrot.lane.b32.xlu0 %v633, 80
        %v636 = vpop.permute.xlu0 %635
        %v637 = vrot.slane %v636, 1
        %v638 = vsel %vm357, %v636, %v637
        %v640 = vadd.f32 %v630, %v638
        %s641 = sld [smem:[#allocation4 + $0x1e]]
        %v642 = vstv %s641
        %v643 = vmul.f32 %v642, %v307
        %645 = vrot.lane.b32.xlu0 %v643, 64
        %v646 = vpop.permute.xlu0 %645
        %v647 = vrot.slane %v646, 1
        %v648 = vsel %vm378, %v646, %v647
        %v650 = vadd.f32 %v640, %v648
        %s651 = sld [smem:[#allocation4 + $0x4f]]
        %v652 = vstv %s651
        %v653 = vmul.f32 %v652, %v319
        %655 = vrot.lane.b32.xlu0 %v653, 64
        %v656 = vpop.permute.xlu0 %655
        %v657 = vrot.slane %v656, 1
        %v658 = vsel %vm378, %v656, %v657
        %v660 = vadd.f32 %v650, %v658
        %s661 = sld [smem:[#allocation4 + $0x25]]
        %v662 = vstv %s661
        %v663 = vmul.f32 %v662, %v307
        %665 = vrot.lane.b32.xlu0 %v663, 48
        %v666 = vpop.permute.xlu0 %665
        %v667 = vrot.slane %v666, 1
        %v668 = vsel %vm399, %v666, %v667
        %v670 = vadd.f32 %v660, %v668
        %s671 = sld [smem:[#allocation4 + $0x56]]
        %v672 = vstv %s671
        %v673 = vmul.f32 %v672, %v319
        %675 = vrot.lane.b32.xlu0 %v673, 48
        %v676 = vpop.permute.xlu0 %675
        %v677 = vrot.slane %v676, 1
        %v678 = vsel %vm399, %v676, %v677
        %v680 = vadd.f32 %v670, %v678
        %s681 = sld [smem:[#allocation4 + $0x2c]]
        %v682 = vstv %s681
        %v683 = vmul.f32 %v682, %v307
        %685 = vrot.lane.b32.xlu0 %v683, 32
        %v686 = vpop.permute.xlu0 %685
        %v687 = vrot.slane %v686, 1
        %v688 = vsel %vm420, %v686, %v687
        %v690 = vadd.f32 %v680, %v688
        %s691 = sld [smem:[#allocation4 + $0x5d]]
        %v692 = vstv %s691
        %v693 = vmul.f32 %v692, %v319
        %695 = vrot.lane.b32.xlu0 %v693, 32
        %v696 = vpop.permute.xlu0 %695
        %v697 = vrot.slane %v696, 1
        %v698 = vsel %vm420, %v696, %v697
        %v700 = vadd.f32 %v690, %v698
        %702 = vrot.lane.b32.xlu0 %v700, 126
        %v703 = vpop.permute.xlu0 %702
        %v704 = vrot.slane %v703, 1
        %vm705 = vcmask 1031168
        %v706 = vsel %vm705, %v703, %v704
        %v708 = vsel %vm203, %v706, 0.0
        %v709 = vadd.f32 %v572, %v708
        %s710 = sld [smem:[#allocation4 + $0x3]]
        %v711 = vstv %s710
        %v712 = vmul.f32 %v711, %v307
        %v713 = vadd.f32 %v712, 0.0
        %s714 = sld [smem:[#allocation4 + $0x34]]
        %v715 = vstv %s714
        %v716 = vmul.f32 %v715, %v319
        %v717 = vadd.f32 %v713, %v716
        %s718 = sld [smem:[#allocation4 + $0xa]]
        %v719 = vstv %s718
        %v720 = vmul.f32 %v719, %v307
        %722 = vrot.lane.b32.xlu0 %v720, 112
        %v723 = vpop.permute.xlu0 %722
        %v724 = vrot.slane %v723, 1
        %v725 = vsel %vm314, %v723, %v724
        %v727 = vadd.f32 %v717, %v725
        %s728 = sld [smem:[#allocation4 + $0x3b]]
        %v729 = vstv %s728
        %v730 = vmul.f32 %v729, %v319
        %732 = vrot.lane.b32.xlu0 %v730, 112
        %v733 = vpop.permute.xlu0 %732
        %v734 = vrot.slane %v733, 1
        %v735 = vsel %vm314, %v733, %v734
        %v737 = vadd.f32 %v727, %v735
        %s738 = sld [smem:[#allocation4 + $0x11]]
        %v739 = vstv %s738
        %v740 = vmul.f32 %v739, %v307
        %742 = vrot.lane.b32.xlu0 %v740, 96
        %v743 = vpop.permute.xlu0 %742
        %v744 = vrot.slane %v743, 1
        %v745 = vsel %vm336, %v743, %v744
        %v747 = vadd.f32 %v737, %v745
        %s748 = sld [smem:[#allocation4 + $0x42]]
        %v749 = vstv %s748
        %v750 = vmul.f32 %v749, %v319
        %752 = vrot.lane.b32.xlu0 %v750, 96
        %v753 = vpop.permute.xlu0 %752
        %v754 = vrot.slane %v753, 1
        %v755 = vsel %vm336, %v753, %v754
        %v757 = vadd.f32 %v747, %v755
        %s758 = sld [smem:[#allocation4 + $0x18]]
        %v759 = vstv %s758
        %v760 = vmul.f32 %v759, %v307
        %762 = vrot.lane.b32.xlu0 %v760, 80
        %v763 = vpop.permute.xlu0 %762
        %v764 = vrot.slane %v763, 1
        %v765 = vsel %vm357, %v763, %v764
        %v767 = vadd.f32 %v757, %v765
        %s768 = sld [smem:[#allocation4 + $0x49]]
        %v769 = vstv %s768
        %v770 = vmul.f32 %v769, %v319
        %772 = vrot.lane.b32.xlu0 %v770, 80
        %v773 = vpop.permute.xlu0 %772
        %v774 = vrot.slane %v773, 1
        %v775 = vsel %vm357, %v773, %v774
        %v777 = vadd.f32 %v767, %v775
        %s778 = sld [smem:[#allocation4 + $0x1f]]
        %v779 = vstv %s778
        %v780 = vmul.f32 %v779, %v307
        %782 = vrot.lane.b32.xlu0 %v780, 64
        %v783 = vpop.permute.xlu0 %782
        %v784 = vrot.slane %v783, 1
        %v785 = vsel %vm378, %v783, %v784
        %v787 = vadd.f32 %v777, %v785
        %s788 = sld [smem:[#allocation4 + $0x50]]
        %v789 = vstv %s788
        %v790 = vmul.f32 %v789, %v319
        %792 = vrot.lane.b32.xlu0 %v790, 64
        %v793 = vpop.permute.xlu0 %792
        %v794 = vrot.slane %v793, 1
        %v795 = vsel %vm378, %v793, %v794
        %v797 = vadd.f32 %v787, %v795
        %s798 = sld [smem:[#allocation4 + $0x26]]
        %v799 = vstv %s798
        %v800 = vmul.f32 %v799, %v307
        %802 = vrot.lane.b32.xlu0 %v800, 48
        %v803 = vpop.permute.xlu0 %802
        %v804 = vrot.slane %v803, 1
        %v805 = vsel %vm399, %v803, %v804
        %v807 = vadd.f32 %v797, %v805
        %s808 = sld [smem:[#allocation4 + $0x57]]
        %v809 = vstv %s808
        %v810 = vmul.f32 %v809, %v319
        %812 = vrot.lane.b32.xlu0 %v810, 48
        %v813 = vpop.permute.xlu0 %812
        %v814 = vrot.slane %v813, 1
        %v815 = vsel %vm399, %v813, %v814
        %v817 = vadd.f32 %v807, %v815
        %s818 = sld [smem:[#allocation4 + $0x2d]]
        %v819 = vstv %s818
        %v820 = vmul.f32 %v819, %v307
        %822 = vrot.lane.b32.xlu0 %v820, 32
        %v823 = vpop.permute.xlu0 %822
        %v824 = vrot.slane %v823, 1
        %v825 = vsel %vm420, %v823, %v824
        %v827 = vadd.f32 %v817, %v825
        %s828 = sld [smem:[#allocation4 + $0x5e]]
        %v829 = vstv %s828
        %v830 = vmul.f32 %v829, %v319
        %832 = vrot.lane.b32.xlu0 %v830, 32
        %v833 = vpop.permute.xlu0 %832
        %v834 = vrot.slane %v833, 1
        %v835 = vsel %vm420, %v833, %v834
        %v837 = vadd.f32 %v827, %v835
        %839 = vrot.lane.b32.xlu0 %v837, 125
        %v840 = vpop.permute.xlu0 %839
        %v841 = vrot.slane %v840, 1
        %vm842 = vcmask 1022976
        %v843 = vsel %vm842, %v840, %v841
        %v845 = vadd.f32 %v709, %v843
        %s846 = sld [smem:[#allocation4 + $0x4]]
        %v847 = vstv %s846
        %v848 = vmul.f32 %v847, %v307
        %v849 = vadd.f32 %v848, 0.0
        %s850 = sld [smem:[#allocation4 + $0x35]]
        %v851 = vstv %s850
        %v852 = vmul.f32 %v851, %v319
        %v853 = vadd.f32 %v849, %v852
        %s854 = sld [smem:[#allocation4 + $0xb]]
        %v855 = vstv %s854
        %v856 = vmul.f32 %v855, %v307
        %858 = vrot.lane.b32.xlu0 %v856, 112
        %v859 = vpop.permute.xlu0 %858
        %v860 = vrot.slane %v859, 1
        %v861 = vsel %vm314, %v859, %v860
        %v863 = vadd.f32 %v853, %v861
        %s864 = sld [smem:[#allocation4 + $0x3c]]
        %v865 = vstv %s864
        %v866 = vmul.f32 %v865, %v319
        %868 = vrot.lane.b32.xlu0 %v866, 112
        %v869 = vpop.permute.xlu0 %868
        %v870 = vrot.slane %v869, 1
        %v871 = vsel %vm314, %v869, %v870
        %v873 = vadd.f32 %v863, %v871
        %s874 = sld [smem:[#allocation4 + $0x12]]
        %v875 = vstv %s874
        %v876 = vmul.f32 %v875, %v307
        %878 = vrot.lane.b32.xlu0 %v876, 96
        %v879 = vpop.permute.xlu0 %878
        %v880 = vrot.slane %v879, 1
        %v881 = vsel %vm336, %v879, %v880
        %v883 = vadd.f32 %v873, %v881
        %s884 = sld [smem:[#allocation4 + $0x43]]
        %v885 = vstv %s884
        %v886 = vmul.f32 %v885, %v319
        %888 = vrot.lane.b32.xlu0 %v886, 96
        %v889 = vpop.permute.xlu0 %888
        %v890 = vrot.slane %v889, 1
        %v891 = vsel %vm336, %v889, %v890
        %v893 = vadd.f32 %v883, %v891
        %s894 = sld [smem:[#allocation4 + $0x19]]
        %v895 = vstv %s894
        %v896 = vmul.f32 %v895, %v307
        %898 = vrot.lane.b32.xlu0 %v896, 80
        %v899 = vpop.permute.xlu0 %898
        %v900 = vrot.slane %v899, 1
        %v901 = vsel %vm357, %v899, %v900
        %v903 = vadd.f32 %v893, %v901
        %s904 = sld [smem:[#allocation4 + $0x4a]]
        %v905 = vstv %s904
        %v906 = vmul.f32 %v905, %v319
        %908 = vrot.lane.b32.xlu0 %v906, 80
        %v909 = vpop.permute.xlu0 %908
        %v910 = vrot.slane %v909, 1
        %v911 = vsel %vm357, %v909, %v910
        %v913 = vadd.f32 %v903, %v911
        %s914 = sld [smem:[#allocation4 + $0x20]]
        %v915 = vstv %s914
        %v916 = vmul.f32 %v915, %v307
        %918 = vrot.lane.b32.xlu0 %v916, 64
        %v919 = vpop.permute.xlu0 %918
        %v920 = vrot.slane %v919, 1
        %v921 = vsel %vm378, %v919, %v920
        %v923 = vadd.f32 %v913, %v921
        %s924 = sld [smem:[#allocation4 + $0x51]]
        %v925 = vstv %s924
        %v926 = vmul.f32 %v925, %v319
        %928 = vrot.lane.b32.xlu0 %v926, 64
        %v929 = vpop.permute.xlu0 %928
        %v930 = vrot.slane %v929, 1
        %v931 = vsel %vm378, %v929, %v930
        %v933 = vadd.f32 %v923, %v931
        %s934 = sld [smem:[#allocation4 + $0x27]]
        %v935 = vstv %s934
        %v936 = vmul.f32 %v935, %v307
        %938 = vrot.lane.b32.xlu0 %v936, 48
        %v939 = vpop.permute.xlu0 %938
        %v940 = vrot.slane %v939, 1
        %v941 = vsel %vm399, %v939, %v940
        %v943 = vadd.f32 %v933, %v941
        %s944 = sld [smem:[#allocation4 + $0x58]]
        %v945 = vstv %s944
        %v946 = vmul.f32 %v945, %v319
        %948 = vrot.lane.b32.xlu0 %v946, 48
        %v949 = vpop.permute.xlu0 %948
        %v950 = vrot.slane %v949, 1
        %v951 = vsel %vm399, %v949, %v950
        %v953 = vadd.f32 %v943, %v951
        %s954 = sld [smem:[#allocation4 + $0x2e]]
        %v955 = vstv %s954
        %v956 = vmul.f32 %v955, %v307
        %958 = vrot.lane.b32.xlu0 %v956, 32
        %v959 = vpop.permute.xlu0 %958
        %v960 = vrot.slane %v959, 1
        %v961 = vsel %vm420, %v959, %v960
        %v963 = vadd.f32 %v953, %v961
        %s964 = sld [smem:[#allocation4 + $0x5f]]
        %v965 = vstv %s964
        %v966 = vmul.f32 %v965, %v319
        %968 = vrot.lane.b32.xlu0 %v966, 32
        %v969 = vpop.permute.xlu0 %968
        %v970 = vrot.slane %v969, 1
        %v971 = vsel %vm420, %v969, %v970
        %v973 = vadd.f32 %v963, %v971
        %975 = vrot.lane.b32.xlu0 %v973, 124
        %v976 = vpop.permute.xlu0 %975
        %v977 = vrot.slane %v976, 1
        %vm978 = vcmask 1014784
        %v979 = vsel %vm978, %v976, %v977
        %v981 = vsel %vm206, %v979, 0.0
        %v982 = vadd.f32 %v845, %v981
        %s983 = sld [smem:[#allocation4 + $0x5]]
        %v984 = vstv %s983
        %v985 = vmul.f32 %v984, %v307
        %v986 = vadd.f32 %v985, 0.0
        %s987 = sld [smem:[#allocation4 + $0x36]]
        %v988 = vstv %s987
        %v989 = vmul.f32 %v988, %v319
        %v990 = vadd.f32 %v986, %v989
        %s991 = sld [smem:[#allocation4 + $0xc]]
        %v992 = vstv %s991
        %v993 = vmul.f32 %v992, %v307
        %995 = vrot.lane.b32.xlu0 %v993, 112
        %v996 = vpop.permute.xlu0 %995
        %v997 = vrot.slane %v996, 1
        %v998 = vsel %vm314, %v996, %v997
        %v1000 = vadd.f32 %v990, %v998
        %s1001 = sld [smem:[#allocation4 + $0x3d]]
        %v1002 = vstv %s1001
        %v1003 = vmul.f32 %v1002, %v319
        %1005 = vrot.lane.b32.xlu0 %v1003, 112
        %v1006 = vpop.permute.xlu0 %1005
        %v1007 = vrot.slane %v1006, 1
        %v1008 = vsel %vm314, %v1006, %v1007
        %v1010 = vadd.f32 %v1000, %v1008
        %s1011 = sld [smem:[#allocation4 + $0x13]]
        %v1012 = vstv %s1011
        %v1013 = vmul.f32 %v1012, %v307
        %1015 = vrot.lane.b32.xlu0 %v1013, 96
        %v1016 = vpop.permute.xlu0 %1015
        %v1017 = vrot.slane %v1016, 1
        %v1018 = vsel %vm336, %v1016, %v1017
        %v1020 = vadd.f32 %v1010, %v1018
        %s1021 = sld [smem:[#allocation4 + $0x44]]
        %v1022 = vstv %s1021
        %v1023 = vmul.f32 %v1022, %v319
        %1025 = vrot.lane.b32.xlu0 %v1023, 96
        %v1026 = vpop.permute.xlu0 %1025
        %v1027 = vrot.slane %v1026, 1
        %v1028 = vsel %vm336, %v1026, %v1027
        %v1030 = vadd.f32 %v1020, %v1028
        %s1031 = sld [smem:[#allocation4 + $0x1a]]
        %v1032 = vstv %s1031
        %v1033 = vmul.f32 %v1032, %v307
        %1035 = vrot.lane.b32.xlu0 %v1033, 80
        %v1036 = vpop.permute.xlu0 %1035
        %v1037 = vrot.slane %v1036, 1
        %v1038 = vsel %vm357, %v1036, %v1037
        %v1040 = vadd.f32 %v1030, %v1038
        %s1041 = sld [smem:[#allocation4 + $0x4b]]
        %v1042 = vstv %s1041
        %v1043 = vmul.f32 %v1042, %v319
        %1045 = vrot.lane.b32.xlu0 %v1043, 80
        %v1046 = vpop.permute.xlu0 %1045
        %v1047 = vrot.slane %v1046, 1
        %v1048 = vsel %vm357, %v1046, %v1047
        %v1050 = vadd.f32 %v1040, %v1048
        %s1051 = sld [smem:[#allocation4 + $0x21]]
        %v1052 = vstv %s1051
        %v1053 = vmul.f32 %v1052, %v307
        %1055 = vrot.lane.b32.xlu0 %v1053, 64
        %v1056 = vpop.permute.xlu0 %1055
        %v1057 = vrot.slane %v1056, 1
        %v1058 = vsel %vm378, %v1056, %v1057
        %v1060 = vadd.f32 %v1050, %v1058
        %s1061 = sld [smem:[#allocation4 + $0x52]]
        %v1062 = vstv %s1061
        %v1063 = vmul.f32 %v1062, %v319
        %1065 = vrot.lane.b32.xlu0 %v1063, 64
        %v1066 = vpop.permute.xlu0 %1065
        %v1067 = vrot.slane %v1066, 1
        %v1068 = vsel %vm378, %v1066, %v1067
        %v1070 = vadd.f32 %v1060, %v1068
        %s1071 = sld [smem:[#allocation4 + $0x28]]
        %v1072 = vstv %s1071
        %v1073 = vmul.f32 %v1072, %v307
        %1075 = vrot.lane.b32.xlu0 %v1073, 48
        %v1076 = vpop.permute.xlu0 %1075
        %v1077 = vrot.slane %v1076, 1
        %v1078 = vsel %vm399, %v1076, %v1077
        %v1080 = vadd.f32 %v1070, %v1078
        %s1081 = sld [smem:[#allocation4 + $0x59]]
        %v1082 = vstv %s1081
        %v1083 = vmul.f32 %v1082, %v319
        %1085 = vrot.lane.b32.xlu0 %v1083, 48
        %v1086 = vpop.permute.xlu0 %1085
        %v1087 = vrot.slane %v1086, 1
        %v1088 = vsel %vm399, %v1086, %v1087
        %v1090 = vadd.f32 %v1080, %v1088
        %s1091 = sld [smem:[#allocation4 + $0x2f]]
        %v1092 = vstv %s1091
        %v1093 = vmul.f32 %v1092, %v307
        %1095 = vrot.lane.b32.xlu0 %v1093, 32
        %v1096 = vpop.permute.xlu0 %1095
        %v1097 = vrot.slane %v1096, 1
        %v1098 = vsel %vm420, %v1096, %v1097
        %v1100 = vadd.f32 %v1090, %v1098
        %s1101 = sld [smem:[#allocation4 + $0x60]]
        %v1102 = vstv %s1101
        %v1103 = vmul.f32 %v1102, %v319
        %1105 = vrot.lane.b32.xlu0 %v1103, 32
        %v1106 = vpop.permute.xlu0 %1105
        %v1107 = vrot.slane %v1106, 1
        %v1108 = vsel %vm420, %v1106, %v1107
        %v1110 = vadd.f32 %v1100, %v1108
        %1112 = vrot.lane.b32.xlu0 %v1110, 123
        %v1113 = vpop.permute.xlu0 %1112
        %v1114 = vrot.slane %v1113, 1
        %vm1115 = vcmask 1006592
        %v1116 = vsel %vm1115, %v1113, %v1114
        %v1118 = vsel %vm208, %v1116, 0.0
        %v1119 = vadd.f32 %v982, %v1118
        %s1120 = sld [smem:[#allocation4 + $0x6]]
        %v1121 = vstv %s1120
        %v1122 = vmul.f32 %v1121, %v307
        %v1123 = vadd.f32 %v1122, 0.0
        %s1124 = sld [smem:[#allocation4 + $0x37]]
        %v1125 = vstv %s1124
        %v1126 = vmul.f32 %v1125, %v319
        %v1127 = vadd.f32 %v1123, %v1126
        %s1128 = sld [smem:[#allocation4 + $0xd]]
        %v1129 = vstv %s1128
        %v1130 = vmul.f32 %v1129, %v307
        %1132 = vrot.lane.b32.xlu0 %v1130, 112
        %v1133 = vpop.permute.xlu0 %1132
        %v1134 = vrot.slane %v1133, 1
        %v1135 = vsel %vm314, %v1133, %v1134
        %v1137 = vadd.f32 %v1127, %v1135
        %s1138 = sld [smem:[#allocation4 + $0x3e]]
        %v1139 = vstv %s1138
        %v1140 = vmul.f32 %v1139, %v319
        %1142 = vrot.lane.b32.xlu0 %v1140, 112
        %v1143 = vpop.permute.xlu0 %1142
        %v1144 = vrot.slane %v1143, 1
        %v1145 = vsel %vm314, %v1143, %v1144
        %v1147 = vadd.f32 %v1137, %v1145
        %s1148 = sld [smem:[#allocation4 + $0x14]]
        %v1149 = vstv %s1148
        %v1150 = vmul.f32 %v1149, %v307
        %1152 = vrot.lane.b32.xlu0 %v1150, 96
        %v1153 = vpop.permute.xlu0 %1152
        %v1154 = vrot.slane %v1153, 1
        %v1155 = vsel %vm336, %v1153, %v1154
        %v1157 = vadd.f32 %v1147, %v1155
        %s1158 = sld [smem:[#allocation4 + $0x45]]
        %v1159 = vstv %s1158
        %v1160 = vmul.f32 %v1159, %v319
        %1162 = vrot.lane.b32.xlu0 %v1160, 96
        %v1163 = vpop.permute.xlu0 %1162
        %v1164 = vrot.slane %v1163, 1
        %v1165 = vsel %vm336, %v1163, %v1164
        %v1167 = vadd.f32 %v1157, %v1165
        %s1168 = sld [smem:[#allocation4 + $0x1b]]
        %v1169 = vstv %s1168
        %v1170 = vmul.f32 %v1169, %v307
        %1172 = vrot.lane.b32.xlu0 %v1170, 80
        %v1173 = vpop.permute.xlu0 %1172
        %v1174 = vrot.slane %v1173, 1
        %v1175 = vsel %vm357, %v1173, %v1174
        %v1177 = vadd.f32 %v1167, %v1175
        %s1178 = sld [smem:[#allocation4 + $0x4c]]
        %v1179 = vstv %s1178
        %v1180 = vmul.f32 %v1179, %v319
        %1182 = vrot.lane.b32.xlu0 %v1180, 80
        %v1183 = vpop.permute.xlu0 %1182
        %v1184 = vrot.slane %v1183, 1
        %v1185 = vsel %vm357, %v1183, %v1184
        %v1187 = vadd.f32 %v1177, %v1185
        %s1188 = sld [smem:[#allocation4 + $0x22]]
        %v1189 = vstv %s1188
        %v1190 = vmul.f32 %v1189, %v307
        %1192 = vrot.lane.b32.xlu0 %v1190, 64
        %v1193 = vpop.permute.xlu0 %1192
        %v1194 = vrot.slane %v1193, 1
        %v1195 = vsel %vm378, %v1193, %v1194
        %v1197 = vadd.f32 %v1187, %v1195
        %s1198 = sld [smem:[#allocation4 + $0x53]]
        %v1199 = vstv %s1198
        %v1200 = vmul.f32 %v1199, %v319
        %1202 = vrot.lane.b32.xlu0 %v1200, 64
        %v1203 = vpop.permute.xlu0 %1202
        %v1204 = vrot.slane %v1203, 1
        %v1205 = vsel %vm378, %v1203, %v1204
        %v1207 = vadd.f32 %v1197, %v1205
        %s1208 = sld [smem:[#allocation4 + $0x29]]
        %v1209 = vstv %s1208
        %v1210 = vmul.f32 %v1209, %v307
        %1212 = vrot.lane.b32.xlu0 %v1210, 48
        %v1213 = vpop.permute.xlu0 %1212
        %v1214 = vrot.slane %v1213, 1
        %v1215 = vsel %vm399, %v1213, %v1214
        %v1217 = vadd.f32 %v1207, %v1215
        %s1218 = sld [smem:[#allocation4 + $0x5a]]
        %v1219 = vstv %s1218
        %v1220 = vmul.f32 %v1219, %v319
        %1222 = vrot.lane.b32.xlu0 %v1220, 48
        %v1223 = vpop.permute.xlu0 %1222
        %v1224 = vrot.slane %v1223, 1
        %v1225 = vsel %vm399, %v1223, %v1224
        %v1227 = vadd.f32 %v1217, %v1225
        %s1228 = sld [smem:[#allocation4 + $0x30]]
        %v1229 = vstv %s1228
        %v1230 = vmul.f32 %v1229, %v307
        %1232 = vrot.lane.b32.xlu0 %v1230, 32
        %v1233 = vpop.permute.xlu0 %1232
        %v1234 = vrot.slane %v1233, 1
        %v1235 = vsel %vm420, %v1233, %v1234
        %v1237 = vadd.f32 %v1227, %v1235
        %s1238 = sld [smem:[#allocation4 + $0x61]]
        %v1239 = vstv %s1238
        %v1240 = vmul.f32 %v1239, %v319
        %1242 = vrot.lane.b32.xlu0 %v1240, 32
        %v1243 = vpop.permute.xlu0 %1242
        %v1244 = vrot.slane %v1243, 1
        %v1245 = vsel %vm420, %v1243, %v1244
        %v1247 = vadd.f32 %v1237, %v1245
        %1249 = vrot.lane.b32.xlu0 %v1247, 122
        %v1250 = vpop.permute.xlu0 %1249
        %v1251 = vrot.slane %v1250, 1
        %vm1252 = vcmask 998400
        %v1253 = vsel %vm1252, %v1250, %v1251
        %v1255 = vsel %vm210, %v1253, 0.0
        %v1256 = vadd.f32 %v1119, %v1255
        %v1257 = vxor.u32 %v1256, 2147483648
        %v1258 = vmul.f32 %v1257, 1.442695
        %v1259 = vpow.pop %v1258
        %v1260 = vadd.f32 %v1259, 1.0
        %v1261 = vrcp.pop %v1260
        %v1262 = vmul.f32 1.0, %v1261
        %v1263 = vld [vmem:[%s179] sm:$0xff]
        %v1265 = vlaneseq
        %v1266 = vshrl.u32 %v1265, 7
        %v1267 = vsub.s32 0, %v1266
        %v1268 = vrot.slane %v1262, %v1267
        %v1269 = vlaneseq
        %v1270 = vshrl.u32 %v1269, 7
        %v1271 = vsub.s32 1, %v1270
        %v1272 = vrot.slane %v1262, %v1271
        %v1273 = vcombine.low %v1268, %v1272
        %v1275 = vmul.f32 %v1263, %v1273
        %1276 = vst [vmem:[%s184] sm:$0xff] %v1275
        %p1277 = scmp.lt.s32.totalorder %s15, 1
        %s1278 = scalar_select %p1277, %s15, 1
        %s1279 = smul.addr %s1278, 2
        %s1280 = smul.addr %s1279, 4
        %s1281 = scalar_lea.vmem %s3, %s1280
        // Predicated region
        $region37: #{spatial_attention_forward.1} parent=31 // pred_check
          %p1282 = pneg %p101
        $region38: #{spatial_attention_forward.1} parent=31 // pred_check_branch
          %1284 = sbr.rel (%p1282) target = $region40
        $region39: #{spatial_attention_forward.1} parent=31 // pred_region
          _
        $region40: #{spatial_attention_forward.1} parent=31 // pred_fallthru
          _
      $region32: #{spatial_attention_forward.1} parent=5 // pred_fallthru
        _
      %p1285 = scmp.le.s32.totalorder 2, %s10
      // Predicated region
      $region41: #{spatial_attention_forward.1} parent=5 // pred_check
        %p1286 = pneg %p1285
      $region42: #{spatial_attention_forward.1} parent=5 // pred_check_branch
        %1288 = sbr.rel (%p1286) target = $region44
      $region43: #{spatial_attention_forward.1} parent=5 // pred_region
        %s1289 = ssub.s32 %s10, 2
        // Predicated region
        $region45: #{spatial_attention_forward.1} parent=43 // pred_check
          %p1290 = pneg %p107
        $region46: #{spatial_attention_forward.1} parent=43 // pred_check_branch
          %1292 = sbr.rel (%p1290) target = $region48
        $region47: #{spatial_attention_forward.1} parent=43 // pred_region
          %p1293 = scmp.lt.s32.totalorder %s16, 1
          %s1294 = scalar_select %p1293, %s16, 1
          %s1295 = smul.addr %s1294, 2
          %s1296 = smul.addr %s1295, 4
          %s1297 = scalar_lea.vmem %s3, %s1296
        $region48: #{spatial_attention_forward.1} parent=43 // pred_fallthru
          _
      $region44: #{spatial_attention_forward.1} parent=5 // pred_fallthru
        _
    $region6: #{spatial_attention_forward.1} parent=1 // loop_footer
      %s14 = sadd.s32 1, %s10
    $region7: #{spatial_attention_forward.1} parent=1 // loop_footer_branch
      %9 = sbr.rel target = $region3
    $region8: #{spatial_attention_forward.1} parent=1 // loop_exit
      _
    %1298 = vsyncpa [#allocation5], 1
    %s1299 = scalar_lea.sflag [#allocation5], 1
    %1300 = vsyncpa %s1299, 1

</llo_original>
